<compile_context>
chip_gen: v7x
topology: tpu7x:2x2x1
jax: 0.10.0
libtpu: 0.0.40
codegen_flags: <defaults>
</compile_context>

<pallas_src>
import functools

import jax
import jax.numpy as jnp
from jax.experimental import pallas as pl
from jax.experimental.pallas import tpu as pltpu


# ----------------------------------------------------------------------------- utils
def _ceil_to(a, m):
    return -(-a // m) * m


def _tile_vmem_bytes(shape, itemsize):
    """Rough VMEM footprint of a tile, accounting for (8,128) layout padding."""
    dims = list(shape)
    if len(dims) >= 2:
        dims[-1] = _ceil_to(dims[-1], 128)
        dims[-2] = _ceil_to(dims[-2], 8)
    n = itemsize
    for d in dims:
        n *= d
    return n


def _vmem_capacity_bytes():
    try:
        return int(pltpu.get_tpu_info().vmem_capacity_bytes)
    except Exception:
        return 64 * 2**20          # conservative (v7x-sized) fallback


def _pick_row_block(h_out, w_out, planes, cout, stride, kernel, h, tile_budget):
    """Largest divisor-of-h_out row tile whose per-tile footprint (bf16 halo scratch
    + double-buffered bf16 output) fits the generation-aware budget, preferring
    TH*W_out <= 512 so the f32 depthwise accumulator stays register-friendly."""
    wp = (w_out - 1) * stride + kernel

    def tile_bytes(th):
        rp = (th - 1) * stride + kernel
        mid = rp * _ceil_to(wp, 8) * _ceil_to(planes, 128) * 2
        out = 2 * _tile_vmem_bytes((th * w_out, cout), 2)
        return mid + out

    def valid(th):
        if h_out % th:
            return False
        if th == h_out:
            return True
        return (th * w_out) % 8 == 0 and (th - 1) * stride + kernel <= h

    cands = [t for t in range(1, h_out + 1) if valid(t) and tile_bytes(t) <= tile_budget]
    if not cands:
        vs = [t for t in range(1, h_out + 1) if valid(t)]
        return min(vs) if vs else h_out
    small = [t for t in cands if t * w_out <= 512]
    return max(small) if small else min(cands)


# ----------------------------------------------------------------------------- kernel
def _fused_block_kernel(x_ref, *refs,
                        H, W, planes, Cout, k, s, p, TH, H_out, W_out, n_tiles,
                        has_expand, final_relu, add_identity):
    """One (batch, output-row-tile) grid point of the fused inverted-residual block.

    x_ref : (1, H*W, Cin) bf16        flattened NHWC input image (resident per batch)
    refs  : [we, be]? wd, bd, wp, bp, o_ref, mid_ref
      we  : (Cin, planes) bf16        1x1 expand weights (BN folded)   [expansion > 1]
      be  : (1, planes)   f32
      wd  : (k*k, planes) f32         depthwise weights (BN folded)
      bd  : (1, planes)   f32
      wp  : (planes, Cout) bf16       1x1 project weights (BN folded)
      bp  : (1, Cout)     f32
      o   : (1, TH*W_out, Cout) bf16  output row tile
      mid : (Rp, Wp, planes) bf16     per-tile zero-padded depthwise window (halo)
    """
    if has_expand:
        we_ref, be_ref, wd_ref, bd_ref, wp_ref, bp_ref, o_ref, mid_ref = refs
    else:
        wd_ref, bd_ref, wp_ref, bp_ref, o_ref, mid_ref = refs
        we_ref = be_ref = None

    i = pl.program_id(1)
    mdt = mid_ref.dtype

    Rp = (TH - 1) * s + k                  # padded rows this tile reads (incl. halo)
    Wp = (W_out - 1) * s + k               # padded cols this tile reads
    Hp_use = (H_out - 1) * s + k           # padded rows touched by any output row
    bot = max(0, Hp_use - (p + H))         # bottom zero rows (last tile only)
    W_use = min(W, Wp - p)                 # real input columns actually used
    right = max(0, Wp - p - W_use)         # right zero-pad columns

    # --- zero only the padding border of the per-tile scratch -----------------------
    if p > 0:
        mid_ref[:, 0:p, :] = jnp.zeros((Rp, p, planes), mdt)
    if right > 0:
        mid_ref[:, p + W_use:Wp, :] = jnp.zeros((Rp, right, planes), mdt)

    # --- 1x1 expand (+ folded BN + ReLU) / copy, only for this tile's halo rows -----
    if n_tiles == 1:
        xa = x_ref[0]                      # (H*W, Cin)
        R_load = H
    else:
        R_load = Rp
        rs = jnp.clip(i * TH * s - p, 0, H - Rp)   # clamped first real input row
        start = rs * W
        if W % 8 == 0:
            start = pl.multiple_of(start, 8)
        xa = x_ref[0, pl.ds(start, R_load * W), :]

    if has_expand:
        e = jnp.dot(xa, we_ref[...], preferred_element_type=jnp.float32)
        e = jnp.maximum(e + be_ref[0], 0.0).astype(mdt)
    else:
        e = xa.astype(mdt)
    e3 = e.reshape(R_load, W, planes)
    if W_use < W:
        e3 = e3[:, :W_use, :]

    if n_tiles == 1:
        if p > 0:
            mid_ref[0:p, p:p + W_use, :] = jnp.zeros((p, W_use, planes), mdt)
        mid_ref[p:p + H, p:p + W_use, :] = e3
        if Rp > p + H:
            mid_ref[p + H:Rp, p:p + W_use, :] = jnp.zeros((Rp - p - H, W_use, planes), mdt)
    else:
        @pl.when(i == 0)
        def _first_tile():                               # top halo rows are zero pad
            if p > 0:
                mid_ref[0:p, p:p + W_use, :] = jnp.zeros((p, W_use, planes), mdt)
            mid_ref[p:Rp, p:p + W_use, :] = e3[0:Rp - p]

        if bot > 0:
            @pl.when(i == n_tiles - 1)
            def _last_tile():                            # bottom halo rows are zero pad
                mid_ref[0:Rp - bot, p:p + W_use, :] = e3[bot:Rp]
                mid_ref[Rp - bot:Rp, p:p + W_use, :] = jnp.zeros((bot, W_use, planes), mdt)
            interior = jnp.logical_and(i > 0, i < n_tiles - 1)
        else:
            interior = i > 0

        @pl.when(interior)
        def _interior_tile():
            mid_ref[:, p:p + W_use, :] = e3

    # --- depthwise k x k conv; bias folded into the accumulator init; strided taps --
    acc = jnp.broadcast_to(bd_ref[0].astype(jnp.float32), (TH, W_out, planes))
    for kh in range(k):
        for kw in range(k):
            if s == 1:
                tap = mid_ref[kh:kh + TH, kw:kw + W_out, :]
            else:
                tap = mid_ref[pl.ds(kh, TH, stride=s), pl.ds(kw, W_out, stride=s), :]
            acc = acc + tap.astype(jnp.float32) * wd_ref[kh * k + kw]
    dw = jnp.maximum(acc, 0.0)                           # ReLU(conv + folded BN bias)

    # --- 1x1 project (+ folded BN) (+ ReLU) (+ residual): one MXU matmul per tile ---
    dw2 = dw.reshape(TH * W_out, planes).astype(jnp.bfloat16)
    y = jnp.dot(dw2, wp_ref[...], preferred_element_type=jnp.float32) + bp_ref[0]
    if final_relu:
        y = jnp.maximum(y, 0.0)
    if add_identity:
        roff = i * TH * W_out
        if (TH * W_out) % 8 == 0:
            roff = pl.multiple_of(roff, 8)
        y = y + x_ref[0, pl.ds(roff, TH * W_out), :].astype(jnp.float32)
    o_ref[0] = y.astype(o_ref.dtype)


# ----------------------------------------------------------------------------- wrapper
@functools.partial(jax.jit,
                   static_argnames=("stride", "kernel", "expansion", "row_block"))
def quant_inverted_res_block(x_nchw, params, *, stride, kernel=3, expansion=1,
                             row_block=None):
    N, Cin, H, W = x_nchw.shape
    planes = params["wd"].shape[-1]
    Cout = params["wp"].shape[-1]
    if expansion == 1:
        assert planes == Cin, "expansion==1 requires in_planes == planes"
    identity = (stride == 1 and Cin == Cout)
    p = 1 if expansion == 1 else kernel // 2
    H_out = (H + 2 * p - kernel) // stride + 1
    W_out = (W + 2 * p - kernel) // stride + 1
    if identity:
        # The residual indexes the flattened input with the output-tile offset.
        assert H_out == H and W_out == W, \
            "identity residual requires H_out==H and W_out==W"

    # Generation-aware VMEM budgeting (v7x: 64 MiB physical; v5e/v6e: 128 MiB).
    phys_vmem = _vmem_capacity_bytes()
    small_vmem = phys_vmem <= 64 * 2**20
    tile_budget = (6 if small_vmem else 12) * 2**20

    TH = row_block if row_block is not None else _pick_row_block(
        H_out, W_out, planes, Cout, stride, kernel, H, tile_budget)
    assert H_out % TH == 0, (TH, H_out)
    if TH != H_out:
        assert (TH * W_out) % 8 == 0, (TH, W_out)
        assert (TH - 1) * stride + kernel <= H, "row-tile halo larger than the image"
    n_tiles = H_out // TH
    Rp = (TH - 1) * stride + kernel
    Wp = (W_out - 1) * stride + kernel

    # NCHW -> NHWC, flatten spatial, bf16 activations (halves HBM traffic).
    x = jnp.transpose(x_nchw, (0, 2, 3, 1)).reshape(N, H * W, Cin).astype(jnp.bfloat16)

    kern = functools.partial(
        _fused_block_kernel,
        H=H, W=W, planes=planes, Cout=Cout, k=kernel, s=stride, p=p,
        TH=TH, H_out=H_out, W_out=W_out, n_tiles=n_tiles,
        has_expand=(expansion > 1), final_relu=(expansion == 1),
        add_identity=identity)

    in_specs = [pl.BlockSpec((1, H * W, Cin), lambda n, i: (n, 0, 0))]
    args = [x]
    if expansion > 1:
        in_specs += [pl.BlockSpec((Cin, planes), lambda n, i: (0, 0)),
                     pl.BlockSpec((1, planes), lambda n, i: (0, 0))]
        args += [params["we"], params["be"]]
    in_specs += [pl.BlockSpec((kernel * kernel, planes), lambda n, i: (0, 0)),
                 pl.BlockSpec((1, planes), lambda n, i: (0, 0)),
                 pl.BlockSpec((planes, Cout), lambda n, i: (0, 0)),
                 pl.BlockSpec((1, Cout), lambda n, i: (0, 0))]
    args += [params["wd"], params["bd"], params["wp"], params["bp"]]

    # VMEM estimate: double-buffered blocks + per-tile bf16 halo scratch + weights.
    est = (2 * _tile_vmem_bytes((H * W, Cin), 2)
           + 2 * _tile_vmem_bytes((TH * W_out, Cout), 2)
           + Rp * _ceil_to(Wp, 8) * _ceil_to(planes, 128) * 2
           + 2 * (_tile_vmem_bytes((Cin, planes), 2)
                  + _tile_vmem_bytes((planes, Cout), 2)
                  + _tile_vmem_bytes((kernel * kernel, planes), 4)
                  + 2 * _tile_vmem_bytes((1, max(planes, Cout)), 4))
           + 2 * 1024 * 1024)
    cap = (32 if small_vmem else 64) * 2**20
    vmem_limit = int(min(cap, max(16 * 2**20, 2 * est)))

    y = pl.pallas_call(
        kern,
        out_shape=jax.ShapeDtypeStruct((N, H_out * W_out, Cout), jnp.bfloat16),
        grid=(N, n_tiles),
        in_specs=in_specs,
        out_specs=pl.BlockSpec((1, TH * W_out, Cout), lambda n, i: (n, i, 0)),
        scratch_shapes=[pltpu.VMEM((Rp, Wp, planes), jnp.bfloat16)],
        compiler_params=pltpu.CompilerParams(
            dimension_semantics=("parallel", "parallel"),
            vmem_limit_bytes=vmem_limit),
    )(*args)

    y = y.reshape(N, H_out, W_out, Cout).astype(jnp.float32)
    return jnp.transpose(y, (0, 3, 1, 2))


# ----------------------------------------------------------------------------- params
def _fold_bn(gamma, beta, mean, var, eps=1e-5):
    scale = gamma / jnp.sqrt(var + eps)
    return scale, beta - mean * scale


def init_params(key, in_planes, out_planes, *, kernel=3, expansion=1):
    """Returns (kernel-ready params with BN folded into the conv weights, raw f32 params)."""
    planes = int(round(expansion * in_planes))
    ks = list(jax.random.split(key, 15))

    def bn_stats(k0, k1, k2, k3, c):
        gamma = 1.0 + 0.1 * jax.random.normal(k0, (c,), jnp.float32)
        beta = 0.1 * jax.random.normal(k1, (c,), jnp.float32)
        mean = 0.1 * jax.random.normal(k2, (c,), jnp.float32)
        var = 0.5 + 0.1 * jnp.abs(jax.random.normal(k3, (c,), jnp.float32))
        return gamma, beta, mean, var

    raw = {}
    if expansion > 1:
        raw["we"] = 0.3 * jax.random.normal(ks[0], (in_planes, planes), jnp.float32)
        raw["bn_e"] = bn_stats(ks[1], ks[2], ks[3], ks[4], planes)
    raw["wd"] = 0.3 * jax.random.normal(ks[5], (kernel, kernel, planes), jnp.float32)
    raw["bn_dw"] = bn_stats(ks[6], ks[7], ks[8], ks[9], planes)
    raw["wp"] = 0.3 * jax.random.normal(ks[10], (planes, out_planes), jnp.float32)
    raw["bn_p"] = bn_stats(ks[11], ks[12], ks[13], ks[14], out_planes)

    params = {}
    if expansion > 1:
        s_e, b_e = _fold_bn(*raw["bn_e"])
        params["we"] = (raw["we"] * s_e[None, :]).astype(jnp.bfloat16)
        params["be"] = b_e.reshape(1, planes).astype(jnp.float32)
    s_d, b_d = _fold_bn(*raw["bn_dw"])
    params["wd"] = (raw["wd"] * s_d[None, None, :]).reshape(kernel * kernel, planes)
    params["bd"] = b_d.reshape(1, planes).astype(jnp.float32)
    s_p, b_p = _fold_bn(*raw["bn_p"])
    params["wp"] = (raw["wp"] * s_p[None, :]).astype(jnp.bfloat16)
    params["bp"] = b_p.reshape(1, out_planes).astype(jnp.float32)
    return params, raw


# ----------------------------------------------------------------------------- reference
def reference_forward(x_nchw, raw, *, stride, kernel=3, expansion=1):
    """Pure-JAX f32 reference implementing the PyTorch forward (inference BN)."""
    x = jnp.transpose(x_nchw, (0, 2, 3, 1)).astype(jnp.float32)
    Cin = x.shape[-1]
    p = 1 if expansion == 1 else kernel // 2
    planes = raw["wd"].shape[-1]
    cout = raw["wp"].shape[-1]
    eps = 1e-5

    def bn(a, stats):
        g, b, m, v = stats
        return (a - m) / jnp.sqrt(v + eps) * g + b

    if expansion > 1:
        h = jnp.einsum("nhwc,cd->nhwd", x, raw["we"])
        h = jax.nn.relu(bn(h, raw["bn_e"]))
    else:
        h = x
    dwk = raw["wd"].reshape(kernel, kernel, 1, planes)
    h = jax.lax.conv_general_dilated(
        h, dwk, window_strides=(stride, stride), padding=[(p, p), (p, p)],
        dimension_numbers=("NHWC", "HWIO", "NHWC"), feature_group_count=planes)
    h = jax.nn.relu(bn(h, raw["bn_dw"]))
    y = jnp.einsum("nhwc,cd->nhwd", h, raw["wp"])
    y = bn(y, raw["bn_p"])
    if expansion == 1:
        y = jax.nn.relu(y)
    if stride == 1 and Cin == cout:
        y = y + x
    return jnp.transpose(y, (0, 3, 1, 2))


# ----------------------------------------------------------------------------- main
if __name__ == "__main__":
    key = jax.random.PRNGKey(0)
    kx1, kp1, kx2, kp2, kx3, kp3 = jax.random.split(key, 6)

    # Config A: expansion=1 -> depthwise 3x3/s1 + BN + ReLU, 1x1 + BN + ReLU,
    #           identity residual. row_block=8 -> 2 row tiles (first/last halo paths).
    N, C, H, W = 2, 4, 16, 16
    x1 = jax.random.normal(kx1, (N, C, H, W), jnp.float32)
    params1, raw1 = init_params(kp1, C, C, kernel=3, expansion=1)
    y1 = quant_inverted_res_block(x1, params1, stride=1, kernel=3, expansion=1,
                                  row_block=8)
    jax.block_until_ready(y1)
    ref1 = reference_forward(x1, raw1, stride=1, kernel=3, expansion=1)
    assert y1.shape == (N, C, H, W), y1.shape
    assert bool(jnp.allclose(y1, ref1, rtol=1e-1, atol=1e-1)), \
        float(jnp.max(jnp.abs(y1 - ref1)))

    # Config B: expansion=2 -> 1x1 expand + BN + ReLU, depthwise 3x3/s2 + BN + ReLU
    #           (strided taps), 1x1 project + BN (no ReLU), no residual.
    N2, Cin2, Cout2, H2, W2 = 2, 4, 8, 16, 16
    x2 = jax.random.normal(kx2, (N2, Cin2, H2, W2), jnp.float32)
    params2, raw2 = init_params(kp2, Cin2, Cout2, kernel=3, expansion=2)
    y2 = quant_inverted_res_block(x2, params2, stride=2, kernel=3, expansion=2)
    jax.block_until_ready(y2)
    ref2 = reference_forward(x2, raw2, stride=2, kernel=3, expansion=2)
    assert y2.shape == (N2, Cout2, H2 // 2, W2 // 2), y2.shape
    assert bool(jnp.allclose(y2, ref2, rtol=1e-1, atol=1e-1)), \
        float(jnp.max(jnp.abs(y2 - ref2)))

    # Config C: expansion=2, stride=1, 4 row tiles -> exercises the interior-tile
    #           halo path of the per-tile expand/copy.
    N3, Cin3, Cout3, H3, W3 = 2, 4, 8, 16, 16
    x3 = jax.random.normal(kx3, (N3, Cin3, H3, W3), jnp.float32)
    params3, raw3 = init_params(kp3, Cin3, Cout3, kernel=3, expansion=2)
    y3 = quant_inverted_res_block(x3, params3, stride=1, kernel=3, expansion=2,
                                  row_block=4)
    jax.block_until_ready(y3)
    ref3 = reference_forward(x3, raw3, stride=1, kernel=3, expansion=2)
    assert y3.shape == (N3, Cout3, H3, W3), y3.shape
    assert bool(jnp.allclose(y3, ref3, rtol=1e-1, atol=1e-1)), \
        float(jnp.max(jnp.abs(y3 - ref3)))

    print("KERNEL_OK")
</pallas_src>

<mosaic_0001>
module attributes {stable_mosaic.version = 11 : i64} {
  func.func @_fused_block_kernel(%arg0: i32, %arg1: i32, %arg2: memref<1x256x4xbf16, #tpu.memory_space<vmem>>, %arg3: memref<9x4xf32, #tpu.memory_space<vmem>>, %arg4: memref<1x4xf32, #tpu.memory_space<vmem>>, %arg5: memref<4x4xbf16, #tpu.memory_space<vmem>>, %arg6: memref<1x4xf32, #tpu.memory_space<vmem>>, %arg7: memref<1x128x4xbf16, #tpu.memory_space<vmem>>, %arg8: memref<10x18x4xbf16, #tpu.memory_space<vmem>>) attributes {dimension_semantics = [#tpu.dimension_semantics<parallel>, #tpu.dimension_semantics<parallel>], iteration_bounds = array<i64: 2, 2>, scalar_prefetch = 0 : i64, scratch_operands = 1 : i64, tpu.core_type = #tpu.core_type<tc>, window_params = [{transform_indices = @transform_0, window_bounds = array<i64: 1, 256, 4>}, {pipeline_mode = #tpu.pipeline_mode<synchronous>, transform_indices = @transform_1, window_bounds = array<i64: 9, 4>}, {pipeline_mode = #tpu.pipeline_mode<synchronous>, transform_indices = @transform_2, window_bounds = array<i64: 1, 4>}, {pipeline_mode = #tpu.pipeline_mode<synchronous>, transform_indices = @transform_3, window_bounds = array<i64: 4, 4>}, {pipeline_mode = #tpu.pipeline_mode<synchronous>, transform_indices = @transform_4, window_bounds = array<i64: 1, 4>}, {transform_indices = @transform_5, window_bounds = array<i64: 1, 128, 4>}]} {
    %cst = arith.constant 0.000000e+00 : bf16
    %0 = vector.broadcast %cst : bf16 to vector<10x1x4xbf16>
    %c0 = arith.constant 0 : index
    %c0_0 = arith.constant 0 : index
    %c0_1 = arith.constant 0 : index
    %1 = vector.load %arg8[%c0, %c0_0, %c0_1] : memref<10x18x4xbf16, #tpu.memory_space<vmem>>, vector<10x1x4xbf16>
    tpu.vector_store %arg8[%c0, %c0_0, %c0_1], %0 {strides = array<i32>} : memref<10x18x4xbf16, #tpu.memory_space<vmem>>, vector<10x1x4xbf16>,
    %cst_2 = arith.constant 0.000000e+00 : bf16
    %2 = vector.broadcast %cst_2 : bf16 to vector<10x1x4xbf16>
    %c0_3 = arith.constant 0 : index
    %c17 = arith.constant 17 : index
    %c0_4 = arith.constant 0 : index
    %3 = vector.load %arg8[%c0_3, %c17, %c0_4] : memref<10x18x4xbf16, #tpu.memory_space<vmem>>, vector<10x1x4xbf16>
    tpu.vector_store %arg8[%c0_3, %c17, %c0_4], %2 {strides = array<i32>} : memref<10x18x4xbf16, #tpu.memory_space<vmem>>, vector<10x1x4xbf16>,
    %c8_i32 = arith.constant 8 : i32
    %4 = arith.muli %arg1, %c8_i32 : i32
    %c1_i32 = arith.constant 1 : i32
    %5 = arith.muli %4, %c1_i32 : i32
    %c1_i32_5 = arith.constant 1 : i32
    %6 = arith.subi %5, %c1_i32_5 : i32
    %c0_i32 = arith.constant 0 : i32
    %c6_i32 = arith.constant 6 : i32
    %7 = arith.maxsi %c0_i32, %6 : i32
    %8 = arith.minsi %c6_i32, %7 : i32
    %c16_i32 = arith.constant 16 : i32
    %9 = arith.muli %8, %c16_i32 : i32
    %10 = tpu.assume_multiple %9, 8 : i32
    %c0_6 = arith.constant 0 : index
    %11 = arith.index_cast %10 : i32 to index
    %c0_7 = arith.constant 0 : index
    %12 = vector.load %arg2[%c0_6, %11, %c0_7] : memref<1x256x4xbf16, #tpu.memory_space<vmem>>, vector<1x160x4xbf16>
    %13 = vector.shape_cast %12 : vector<1x160x4xbf16> to vector<160x4xbf16>
    %14 = vector.shape_cast %13 : vector<160x4xbf16> to vector<10x16x4xbf16>
    %c0_i32_8 = arith.constant 0 : i32
    %15 = arith.cmpi eq, %arg1, %c0_i32_8 : i32
    %16 = arith.extui %15 : i1 to i32
    %c0_i32_9 = arith.constant 0 : i32
    %17 = arith.cmpi ne, %16, %c0_i32_9 : i32
    scf.if %17 {
      %cst_68 = arith.constant 0.000000e+00 : bf16
      %127 = vector.broadcast %cst_68 : bf16 to vector<1x16x4xbf16>
      %c0_69 = arith.constant 0 : index
      %c1_70 = arith.constant 1 : index
      %c0_71 = arith.constant 0 : index
      %128 = vector.load %arg8[%c0_69, %c1_70, %c0_71] : memref<10x18x4xbf16, #tpu.memory_space<vmem>>, vector<1x16x4xbf16>
      tpu.vector_store %arg8[%c0_69, %c1_70, %c0_71], %127 {strides = array<i32>} : memref<10x18x4xbf16, #tpu.memory_space<vmem>>, vector<1x16x4xbf16>,
      %129 = vector.extract_strided_slice %14 {offsets = [0, 0, 0], sizes = [9, 16, 4], strides = [1, 1, 1]} : vector<10x16x4xbf16> to vector<9x16x4xbf16>
      %c1_72 = arith.constant 1 : index
      %c1_73 = arith.constant 1 : index
      %c0_74 = arith.constant 0 : index
      %130 = vector.load %arg8[%c1_72, %c1_73, %c0_74] : memref<10x18x4xbf16, #tpu.memory_space<vmem>>, vector<9x16x4xbf16>
      tpu.vector_store %arg8[%c1_72, %c1_73, %c0_74], %129 {strides = array<i32>} : memref<10x18x4xbf16, #tpu.memory_space<vmem>>, vector<9x16x4xbf16>,
    } else {
    }
    %c1_i32_10 = arith.constant 1 : i32
    %18 = arith.cmpi eq, %arg1, %c1_i32_10 : i32
    %19 = arith.extui %18 : i1 to i32
    %c0_i32_11 = arith.constant 0 : i32
    %20 = arith.cmpi ne, %19, %c0_i32_11 : i32
    scf.if %20 {
      %127 = vector.extract_strided_slice %14 {offsets = [1, 0, 0], sizes = [9, 16, 4], strides = [1, 1, 1]} : vector<10x16x4xbf16> to vector<9x16x4xbf16>
      %c0_68 = arith.constant 0 : index
      %c1_69 = arith.constant 1 : index
      %c0_70 = arith.constant 0 : index
      %128 = vector.load %arg8[%c0_68, %c1_69, %c0_70] : memref<10x18x4xbf16, #tpu.memory_space<vmem>>, vector<9x16x4xbf16>
      tpu.vector_store %arg8[%c0_68, %c1_69, %c0_70], %127 {strides = array<i32>} : memref<10x18x4xbf16, #tpu.memory_space<vmem>>, vector<9x16x4xbf16>,
      %cst_71 = arith.constant 0.000000e+00 : bf16
      %129 = vector.broadcast %cst_71 : bf16 to vector<1x16x4xbf16>
      %c9 = arith.constant 9 : index
      %c1_72 = arith.constant 1 : index
      %c0_73 = arith.constant 0 : index
      %130 = vector.load %arg8[%c9, %c1_72, %c0_73] : memref<10x18x4xbf16, #tpu.memory_space<vmem>>, vector<1x16x4xbf16>
      tpu.vector_store %arg8[%c9, %c1_72, %c0_73], %129 {strides = array<i32>} : memref<10x18x4xbf16, #tpu.memory_space<vmem>>, vector<1x16x4xbf16>,
    } else {
    }
    %c0_i32_12 = arith.constant 0 : i32
    %21 = arith.cmpi sgt, %arg1, %c0_i32_12 : i32
    %c1_i32_13 = arith.constant 1 : i32
    %22 = arith.cmpi slt, %arg1, %c1_i32_13 : i32
    %23 = arith.andi %21, %22 : i1
    %24 = arith.extui %23 : i1 to i32
    %c0_i32_14 = arith.constant 0 : i32
    %25 = arith.cmpi ne, %24, %c0_i32_14 : i32
    scf.if %25 {
      %c0_68 = arith.constant 0 : index
      %c1_69 = arith.constant 1 : index
      %c0_70 = arith.constant 0 : index
      %127 = vector.load %arg8[%c0_68, %c1_69, %c0_70] : memref<10x18x4xbf16, #tpu.memory_space<vmem>>, vector<10x16x4xbf16>
      tpu.vector_store %arg8[%c0_68, %c1_69, %c0_70], %14 {strides = array<i32>} : memref<10x18x4xbf16, #tpu.memory_space<vmem>>, vector<10x16x4xbf16>,
    } else {
    }
    %c0_15 = arith.constant 0 : index
    %c0_16 = arith.constant 0 : index
    %26 = vector.load %arg4[%c0_15, %c0_16] : memref<1x4xf32, #tpu.memory_space<vmem>>, vector<1x4xf32>
    %27 = vector.shape_cast %26 : vector<1x4xf32> to vector<4xf32>
    %28 = vector.shape_cast %27 : vector<4xf32> to vector<1x1x4xf32>
    %29 = vector.broadcast %28 : vector<1x1x4xf32> to vector<8x16x4xf32>
    %c0_17 = arith.constant 0 : index
    %c0_18 = arith.constant 0 : index
    %c0_19 = arith.constant 0 : index
    %30 = vector.load %arg8[%c0_17, %c0_18, %c0_19] : memref<10x18x4xbf16, #tpu.memory_space<vmem>>, vector<8x16x4xbf16>
    %31 = arith.extf %30 : vector<8x16x4xbf16> to vector<8x16x4xf32>
    %c0_20 = arith.constant 0 : index
    %c0_21 = arith.constant 0 : index
    %32 = vector.load %arg3[%c0_20, %c0_21] : memref<9x4xf32, #tpu.memory_space<vmem>>, vector<1x4xf32>
    %33 = vector.shape_cast %32 : vector<1x4xf32> to vector<4xf32>
    %34 = vector.shape_cast %33 : vector<4xf32> to vector<1x1x4xf32>
    %35 = vector.broadcast %34 : vector<1x1x4xf32> to vector<8x16x4xf32>
    %36 = arith.mulf %31, %35 : vector<8x16x4xf32>
    %37 = arith.addf %29, %36 : vector<8x16x4xf32>
    %c0_22 = arith.constant 0 : index
    %c1 = arith.constant 1 : index
    %c0_23 = arith.constant 0 : index
    %38 = vector.load %arg8[%c0_22, %c1, %c0_23] : memref<10x18x4xbf16, #tpu.memory_space<vmem>>, vector<8x16x4xbf16>
    %39 = arith.extf %38 : vector<8x16x4xbf16> to vector<8x16x4xf32>
    %c1_24 = arith.constant 1 : index
    %c0_25 = arith.constant 0 : index
    %40 = vector.load %arg3[%c1_24, %c0_25] : memref<9x4xf32, #tpu.memory_space<vmem>>, vector<1x4xf32>
    %41 = vector.shape_cast %40 : vector<1x4xf32> to vector<4xf32>
    %42 = vector.shape_cast %41 : vector<4xf32> to vector<1x1x4xf32>
    %43 = vector.broadcast %42 : vector<1x1x4xf32> to vector<8x16x4xf32>
    %44 = arith.mulf %39, %43 : vector<8x16x4xf32>
    %45 = arith.addf %37, %44 : vector<8x16x4xf32>
    %c0_26 = arith.constant 0 : index
    %c2 = arith.constant 2 : index
    %c0_27 = arith.constant 0 : index
    %46 = vector.load %arg8[%c0_26, %c2, %c0_27] : memref<10x18x4xbf16, #tpu.memory_space<vmem>>, vector<8x16x4xbf16>
    %47 = arith.extf %46 : vector<8x16x4xbf16> to vector<8x16x4xf32>
    %c2_28 = arith.constant 2 : index
    %c0_29 = arith.constant 0 : index
    %48 = vector.load %arg3[%c2_28, %c0_29] : memref<9x4xf32, #tpu.memory_space<vmem>>, vector<1x4xf32>
    %49 = vector.shape_cast %48 : vector<1x4xf32> to vector<4xf32>
    %50 = vector.shape_cast %49 : vector<4xf32> to vector<1x1x4xf32>
    %51 = vector.broadcast %50 : vector<1x1x4xf32> to vector<8x16x4xf32>
    %52 = arith.mulf %47, %51 : vector<8x16x4xf32>
    %53 = arith.addf %45, %52 : vector<8x16x4xf32>
    %c1_30 = arith.constant 1 : index
    %c0_31 = arith.constant 0 : index
    %c0_32 = arith.constant 0 : index
    %54 = vector.load %arg8[%c1_30, %c0_31, %c0_32] : memref<10x18x4xbf16, #tpu.memory_space<vmem>>, vector<8x16x4xbf16>
    %55 = arith.extf %54 : vector<8x16x4xbf16> to vector<8x16x4xf32>
    %c3 = arith.constant 3 : index
    %c0_33 = arith.constant 0 : index
    %56 = vector.load %arg3[%c3, %c0_33] : memref<9x4xf32, #tpu.memory_space<vmem>>, vector<1x4xf32>
    %57 = vector.shape_cast %56 : vector<1x4xf32> to vector<4xf32>
    %58 = vector.shape_cast %57 : vector<4xf32> to vector<1x1x4xf32>
    %59 = vector.broadcast %58 : vector<1x1x4xf32> to vector<8x16x4xf32>
    %60 = arith.mulf %55, %59 : vector<8x16x4xf32>
    %61 = arith.addf %53, %60 : vector<8x16x4xf32>
    %c1_34 = arith.constant 1 : index
    %c1_35 = arith.constant 1 : index
    %c0_36 = arith.constant 0 : index
    %62 = vector.load %arg8[%c1_34, %c1_35, %c0_36] : memref<10x18x4xbf16, #tpu.memory_space<vmem>>, vector<8x16x4xbf16>
    %63 = arith.extf %62 : vector<8x16x4xbf16> to vector<8x16x4xf32>
    %c4 = arith.constant 4 : index
    %c0_37 = arith.constant 0 : index
    %64 = vector.load %arg3[%c4, %c0_37] : memref<9x4xf32, #tpu.memory_space<vmem>>, vector<1x4xf32>
    %65 = vector.shape_cast %64 : vector<1x4xf32> to vector<4xf32>
    %66 = vector.shape_cast %65 : vector<4xf32> to vector<1x1x4xf32>
    %67 = vector.broadcast %66 : vector<1x1x4xf32> to vector<8x16x4xf32>
    %68 = arith.mulf %63, %67 : vector<8x16x4xf32>
    %69 = arith.addf %61, %68 : vector<8x16x4xf32>
    %c1_38 = arith.constant 1 : index
    %c2_39 = arith.constant 2 : index
    %c0_40 = arith.constant 0 : index
    %70 = vector.load %arg8[%c1_38, %c2_39, %c0_40] : memref<10x18x4xbf16, #tpu.memory_space<vmem>>, vector<8x16x4xbf16>
    %71 = arith.extf %70 : vector<8x16x4xbf16> to vector<8x16x4xf32>
    %c5 = arith.constant 5 : index
    %c0_41 = arith.constant 0 : index
    %72 = vector.load %arg3[%c5, %c0_41] : memref<9x4xf32, #tpu.memory_space<vmem>>, vector<1x4xf32>
    %73 = vector.shape_cast %72 : vector<1x4xf32> to vector<4xf32>
    %74 = vector.shape_cast %73 : vector<4xf32> to vector<1x1x4xf32>
    %75 = vector.broadcast %74 : vector<1x1x4xf32> to vector<8x16x4xf32>
    %76 = arith.mulf %71, %75 : vector<8x16x4xf32>
    %77 = arith.addf %69, %76 : vector<8x16x4xf32>
    %c2_42 = arith.constant 2 : index
    %c0_43 = arith.constant 0 : index
    %c0_44 = arith.constant 0 : index
    %78 = vector.load %arg8[%c2_42, %c0_43, %c0_44] : memref<10x18x4xbf16, #tpu.memory_space<vmem>>, vector<8x16x4xbf16>
    %79 = arith.extf %78 : vector<8x16x4xbf16> to vector<8x16x4xf32>
    %c6 = arith.constant 6 : index
    %c0_45 = arith.constant 0 : index
    %80 = vector.load %arg3[%c6, %c0_45] : memref<9x4xf32, #tpu.memory_space<vmem>>, vector<1x4xf32>
    %81 = vector.shape_cast %80 : vector<1x4xf32> to vector<4xf32>
    %82 = vector.shape_cast %81 : vector<4xf32> to vector<1x1x4xf32>
    %83 = vector.broadcast %82 : vector<1x1x4xf32> to vector<8x16x4xf32>
    %84 = arith.mulf %79, %83 : vector<8x16x4xf32>
    %85 = arith.addf %77, %84 : vector<8x16x4xf32>
    %c2_46 = arith.constant 2 : index
    %c1_47 = arith.constant 1 : index
    %c0_48 = arith.constant 0 : index
    %86 = vector.load %arg8[%c2_46, %c1_47, %c0_48] : memref<10x18x4xbf16, #tpu.memory_space<vmem>>, vector<8x16x4xbf16>
    %87 = arith.extf %86 : vector<8x16x4xbf16> to vector<8x16x4xf32>
    %c7 = arith.constant 7 : index
    %c0_49 = arith.constant 0 : index
    %88 = vector.load %arg3[%c7, %c0_49] : memref<9x4xf32, #tpu.memory_space<vmem>>, vector<1x4xf32>
    %89 = vector.shape_cast %88 : vector<1x4xf32> to vector<4xf32>
    %90 = vector.shape_cast %89 : vector<4xf32> to vector<1x1x4xf32>
    %91 = vector.broadcast %90 : vector<1x1x4xf32> to vector<8x16x4xf32>
    %92 = arith.mulf %87, %91 : vector<8x16x4xf32>
    %93 = arith.addf %85, %92 : vector<8x16x4xf32>
    %c2_50 = arith.constant 2 : index
    %c2_51 = arith.constant 2 : index
    %c0_52 = arith.constant 0 : index
    %94 = vector.load %arg8[%c2_50, %c2_51, %c0_52] : memref<10x18x4xbf16, #tpu.memory_space<vmem>>, vector<8x16x4xbf16>
    %95 = arith.extf %94 : vector<8x16x4xbf16> to vector<8x16x4xf32>
    %c8 = arith.constant 8 : index
    %c0_53 = arith.constant 0 : index
    %96 = vector.load %arg3[%c8, %c0_53] : memref<9x4xf32, #tpu.memory_space<vmem>>, vector<1x4xf32>
    %97 = vector.shape_cast %96 : vector<1x4xf32> to vector<4xf32>
    %98 = vector.shape_cast %97 : vector<4xf32> to vector<1x1x4xf32>
    %99 = vector.broadcast %98 : vector<1x1x4xf32> to vector<8x16x4xf32>
    %100 = arith.mulf %95, %99 : vector<8x16x4xf32>
    %101 = arith.addf %93, %100 : vector<8x16x4xf32>
    %cst_54 = arith.constant 0.000000e+00 : f32
    %102 = vector.broadcast %cst_54 : f32 to vector<8x16x4xf32>
    %103 = arith.maximumf %101, %102 : vector<8x16x4xf32>
    %104 = vector.shape_cast %103 : vector<8x16x4xf32> to vector<128x4xf32>
    %105 = arith.truncf %104 : vector<128x4xf32> to vector<128x4xbf16>
    %c0_55 = arith.constant 0 : index
    %c0_56 = arith.constant 0 : index
    %106 = vector.load %arg5[%c0_55, %c0_56] : memref<4x4xbf16, #tpu.memory_space<vmem>>, vector<4x4xbf16>
    %cst_57 = arith.constant dense<0.000000e+00> : vector<128x4xf32>
    %107 = tpu.matmul %105, %106, %cst_57 {dimension_numbers = #tpu.dot_dimension_numbers<[1], [0], [0], [1], [0, 0, 1, 1], [], []>} : vector<128x4xbf16>, vector<4x4xbf16>, vector<128x4xf32> -> vector<128x4xf32>
    %c0_58 = arith.constant 0 : index
    %c0_59 = arith.constant 0 : index
    %108 = vector.load %arg6[%c0_58, %c0_59] : memref<1x4xf32, #tpu.memory_space<vmem>>, vector<1x4xf32>
    %109 = vector.shape_cast %108 : vector<1x4xf32> to vector<4xf32>
    %110 = vector.shape_cast %109 : vector<4xf32> to vector<1x4xf32>
    %111 = vector.broadcast %110 : vector<1x4xf32> to vector<128x4xf32>
    %112 = arith.addf %107, %111 : vector<128x4xf32>
    %cst_60 = arith.constant 0.000000e+00 : f32
    %113 = vector.broadcast %cst_60 : f32 to vector<128x4xf32>
    %114 = arith.maximumf %112, %113 : vector<128x4xf32>
    %c8_i32_61 = arith.constant 8 : i32
    %115 = arith.muli %arg1, %c8_i32_61 : i32
    %c16_i32_62 = arith.constant 16 : i32
    %116 = arith.muli %115, %c16_i32_62 : i32
    %117 = tpu.assume_multiple %116, 8 : i32
    %c0_63 = arith.constant 0 : index
    %118 = arith.index_cast %117 : i32 to index
    %c0_64 = arith.constant 0 : index
    %119 = vector.load %arg2[%c0_63, %118, %c0_64] : memref<1x256x4xbf16, #tpu.memory_space<vmem>>, vector<1x128x4xbf16>
    %120 = vector.shape_cast %119 : vector<1x128x4xbf16> to vector<128x4xbf16>
    %121 = arith.extf %120 : vector<128x4xbf16> to vector<128x4xf32>
    %122 = arith.addf %114, %121 : vector<128x4xf32>
    %123 = arith.truncf %122 : vector<128x4xf32> to vector<128x4xbf16>
    %c0_65 = arith.constant 0 : index
    %c0_66 = arith.constant 0 : index
    %c0_67 = arith.constant 0 : index
    %124 = vector.load %arg7[%c0_65, %c0_66, %c0_67] : memref<1x128x4xbf16, #tpu.memory_space<vmem>>, vector<1x128x4xbf16>
    %125 = vector.shape_cast %124 : vector<1x128x4xbf16> to vector<128x4xbf16>
    %126 = vector.shape_cast %123 : vector<128x4xbf16> to vector<1x128x4xbf16>
    tpu.vector_store %arg7[%c0_65, %c0_66, %c0_67], %126 {strides = array<i32>} : memref<1x128x4xbf16, #tpu.memory_space<vmem>>, vector<1x128x4xbf16>,
    return
  }
  func.func @transform_0(%arg0: i32, %arg1: i32) -> (i32, i32, i32) {
    %c0_i32 = arith.constant 0 : i32
    %c0_i32_0 = arith.constant 0 : i32
    %c0_i32_1 = arith.constant 0 : i32
    return %arg0, %c0_i32, %c0_i32_0 : i32, i32, i32
  }
  func.func @transform_1(%arg0: i32, %arg1: i32) -> (i32, i32) {
    %c0_i32 = arith.constant 0 : i32
    %c0_i32_0 = arith.constant 0 : i32
    %c0_i32_1 = arith.constant 0 : i32
    return %c0_i32, %c0_i32_0 : i32, i32
  }
  func.func @transform_2(%arg0: i32, %arg1: i32) -> (i32, i32) {
    %c0_i32 = arith.constant 0 : i32
    %c0_i32_0 = arith.constant 0 : i32
    %c0_i32_1 = arith.constant 0 : i32
    return %c0_i32, %c0_i32_0 : i32, i32
  }
  func.func @transform_3(%arg0: i32, %arg1: i32) -> (i32, i32) {
    %c0_i32 = arith.constant 0 : i32
    %c0_i32_0 = arith.constant 0 : i32
    %c0_i32_1 = arith.constant 0 : i32
    return %c0_i32, %c0_i32_0 : i32, i32
  }
  func.func @transform_4(%arg0: i32, %arg1: i32) -> (i32, i32) {
    %c0_i32 = arith.constant 0 : i32
    %c0_i32_0 = arith.constant 0 : i32
    %c0_i32_1 = arith.constant 0 : i32
    return %c0_i32, %c0_i32_0 : i32, i32
  }
  func.func @transform_5(%arg0: i32, %arg1: i32) -> (i32, i32, i32) {
    %c0_i32 = arith.constant 0 : i32
    %c0_i32_0 = arith.constant 0 : i32
    return %arg0, %arg1, %c0_i32 : i32, i32, i32
  }
}

</mosaic_0001>

<llo_original>
// kernel: quant_inverted_res_block.1
$region0: #{quant_inverted_res_block.1}
  #allocation0 [shape = 'u32[]', space=smem, size = 0x4, offset = 0x4, fixed_abs, tag = 'smem constant byte address 0x4 - core index']
  #allocation1 [shape = 'u32[144,128]{1,0:T(1,128)}', space=vmem, size = 0x12000, scoped, tag = 'internal scratch']
  #allocation2 [shape = 'bf16[10,18,4]{2,1,0:T(8,128)(2,1)}', space=vmem, size = 0xf000, scoped, tag = 'scratch operand']
  %s0 = inlined_call_operand.vmem [shape: bf16[2,256,4], index: 0, kind: input, shape index: {}]
  %s1 = inlined_call_operand.vmem [shape: f32[9,4], index: 1, kind: input, shape index: {}]
  %s2 = inlined_call_operand.vmem [shape: f32[1,4], index: 2, kind: input, shape index: {}]
  %s3 = inlined_call_operand.vmem [shape: bf16[4,4], index: 3, kind: input, shape index: {}]
  %s4 = inlined_call_operand.vmem [shape: f32[1,4], index: 4, kind: input, shape index: {}]
  %s5 = inlined_call_operand.vmem [shape: bf16[2,256,4], index: 5, kind: output, shape index: {}]
  %s6 = sld [smem:[#allocation0]]
  $region65: #{quant_inverted_res_block.1} parent=0
    _
  %s8 = ssub.s32 1, %s6
  %s9 = scalar_select 0, %s8, %s6
  loop: start=0, step=1, limit=6
  $region2: #{quant_inverted_res_block.1} parent=0 // loop_pre_header
    _
  $region3: #{quant_inverted_res_block.1} parent=0 // loop_header
    %s11 = sphi 0, %s15
    %p12 = scmp.ge.s32.totalorder %s11, 6
    %s18 = sphi 0, %s30
    %s19 = sphi 0, %s26
    %s20 = sphi 0, %s18
    %s21 = sphi 0, %s19
    %s22 = sphi 0, %s20
    %s23 = sphi 0, %s21
    %s33 = sphi 0, %s35
    %s36 = sphi 0, %s33
    %s37 = sphi 0, %s36
    %s53 = sphi 0, %s37
    %s57 = sphi 0, %s57
    %s59 = sphi 0, %s57
    %s60 = sphi 0, %s59
    %s74 = sphi 0, %s60
    %s78 = sphi 0, %s78
    %s80 = sphi 0, %s78
    %s81 = sphi 0, %s80
    %s95 = sphi 0, %s81
    %s99 = sphi 0, %s99
    %s101 = sphi 0, %s99
    %s102 = sphi 0, %s101
    %s116 = sphi 0, %s102
    %s120 = sphi 0, %s120
    %s122 = sphi 0, %s120
    %s123 = sphi 0, %s122
    %s137 = sphi 0, %s123
    %s145 = sphi 0, %s147
    %s148 = sphi 0, %s145
    %s149 = sphi 0, %s148
    %s165 = sphi 0, %s149
  $region4: #{quant_inverted_res_block.1} parent=0 // loop_header_branch
    %14 = sbr.rel (%p12) target = $region8
  $region5: #{quant_inverted_res_block.1} parent=0 // loop_body
    %s16 = ssub.s32 %s11, 1
    %s17 = ssub.s32 %s11, 2
    %s24 = sadd.s32 1, %s19
    %p25 = scmp.ge.s32.totalorder %s24, 2
    %s26 = scalar_select %p25, 0, %s24
    %s27 = sadd.s32 1, %s18
    %s28 = scalar_select %p25, %s27, %s18
    %p29 = scmp.ge.s32.totalorder %s28, 2
    %s30 = scalar_select %p29, 0, %s28
    %s31 = ssub.s32 %s18, %s30
    %p32 = scmp.eq.s32.totalorder %s31, 0
    %s34 = sadd.s32 %s33, 1
    %s35 = scalar_select %p32, %s33, %s34
    %p38 = pneg %p32
    %p39 = scmp.eq.s32.totalorder %s11, 3
    %p40 = por %p38, %p39
    %p41 = scmp.ne.s32.totalorder %s33, %s36
    %p42 = scmp.eq.s32.totalorder %s11, 0
    %p43 = por %p41, %p42
    %p44 = scmp.ne.s32.totalorder %s33, %s36
    %p45 = scmp.eq.s32.totalorder %s16, 3
    %p46 = por %p44, %p45
    %p47 = scmp.ne.s32.totalorder %s36, %s37
    %p48 = scmp.eq.s32.totalorder %s16, 0
    %p49 = por %p47, %p48
    %p50 = scmp.ne.s32.totalorder %s36, %s37
    %p51 = scmp.eq.s32.totalorder %s17, 3
    %p52 = por %p50, %p51
    %p54 = scmp.ne.s32.totalorder %s37, %s53
    %p55 = scmp.eq.s32.totalorder %s17, 0
    %p56 = por %p54, %p55
    %s58 = sadd.s32 %s57, 1
    %p61 = scmp.eq.s32.totalorder %s11, 3
    %p62 = scmp.ne.s32.totalorder %s57, %s59
    %p63 = scmp.eq.s32.totalorder %s11, 0
    %p64 = por %p62, %p63
    %p65 = scmp.ne.s32.totalorder %s57, %s59
    %p66 = scmp.eq.s32.totalorder %s16, 3
    %p67 = por %p65, %p66
    %p68 = scmp.ne.s32.totalorder %s59, %s60
    %p69 = scmp.eq.s32.totalorder %s16, 0
    %p70 = por %p68, %p69
    %p71 = scmp.ne.s32.totalorder %s59, %s60
    %p72 = scmp.eq.s32.totalorder %s17, 3
    %p73 = por %p71, %p72
    %p75 = scmp.ne.s32.totalorder %s60, %s74
    %p76 = scmp.eq.s32.totalorder %s17, 0
    %p77 = por %p75, %p76
    %s79 = sadd.s32 %s78, 1
    %p82 = scmp.eq.s32.totalorder %s11, 3
    %p83 = scmp.ne.s32.totalorder %s78, %s80
    %p84 = scmp.eq.s32.totalorder %s11, 0
    %p85 = por %p83, %p84
    %p86 = scmp.ne.s32.totalorder %s78, %s80
    %p87 = scmp.eq.s32.totalorder %s16, 3
    %p88 = por %p86, %p87
    %p89 = scmp.ne.s32.totalorder %s80, %s81
    %p90 = scmp.eq.s32.totalorder %s16, 0
    %p91 = por %p89, %p90
    %p92 = scmp.ne.s32.totalorder %s80, %s81
    %p93 = scmp.eq.s32.totalorder %s17, 3
    %p94 = por %p92, %p93
    %p96 = scmp.ne.s32.totalorder %s81, %s95
    %p97 = scmp.eq.s32.totalorder %s17, 0
    %p98 = por %p96, %p97
    %s100 = sadd.s32 %s99, 1
    %p103 = scmp.eq.s32.totalorder %s11, 3
    %p104 = scmp.ne.s32.totalorder %s99, %s101
    %p105 = scmp.eq.s32.totalorder %s11, 0
    %p106 = por %p104, %p105
    %p107 = scmp.ne.s32.totalorder %s99, %s101
    %p108 = scmp.eq.s32.totalorder %s16, 3
    %p109 = por %p107, %p108
    %p110 = scmp.ne.s32.totalorder %s101, %s102
    %p111 = scmp.eq.s32.totalorder %s16, 0
    %p112 = por %p110, %p111
    %p113 = scmp.ne.s32.totalorder %s101, %s102
    %p114 = scmp.eq.s32.totalorder %s17, 3
    %p115 = por %p113, %p114
    %p117 = scmp.ne.s32.totalorder %s102, %s116
    %p118 = scmp.eq.s32.totalorder %s17, 0
    %p119 = por %p117, %p118
    %s121 = sadd.s32 %s120, 1
    %p124 = scmp.eq.s32.totalorder %s11, 3
    %p125 = scmp.ne.s32.totalorder %s120, %s122
    %p126 = scmp.eq.s32.totalorder %s11, 0
    %p127 = por %p125, %p126
    %p128 = scmp.ne.s32.totalorder %s120, %s122
    %p129 = scmp.eq.s32.totalorder %s16, 3
    %p130 = por %p128, %p129
    %p131 = scmp.ne.s32.totalorder %s122, %s123
    %p132 = scmp.eq.s32.totalorder %s16, 0
    %p133 = por %p131, %p132
    %p134 = scmp.ne.s32.totalorder %s122, %s123
    %p135 = scmp.eq.s32.totalorder %s17, 3
    %p136 = por %p134, %p135
    %p138 = scmp.ne.s32.totalorder %s123, %s137
    %p139 = scmp.eq.s32.totalorder %s17, 0
    %p140 = por %p138, %p139
    %s141 = ssub.s32 %s18, %s30
    %s142 = ssub.s32 %s19, %s26
    %s143 = sor.u32 %s141, %s142
    %p144 = scmp.eq.s32.totalorder %s143, 0
    %s146 = sadd.s32 %s145, 1
    %s147 = scalar_select %p144, %s145, %s146
    %p150 = pneg %p144
    %p151 = scmp.eq.s32.totalorder %s11, 3
    %p152 = por %p150, %p151
    %p153 = scmp.ne.s32.totalorder %s145, %s148
    %p154 = scmp.eq.s32.totalorder %s11, 0
    %p155 = por %p153, %p154
    %p156 = scmp.ne.s32.totalorder %s145, %s148
    %p157 = scmp.eq.s32.totalorder %s16, 3
    %p158 = por %p156, %p157
    %p159 = scmp.ne.s32.totalorder %s148, %s149
    %p160 = scmp.eq.s32.totalorder %s16, 0
    %p161 = por %p159, %p160
    %p162 = scmp.ne.s32.totalorder %s148, %s149
    %p163 = scmp.eq.s32.totalorder %s17, 3
    %p164 = por %p162, %p163
    %p166 = scmp.ne.s32.totalorder %s149, %s165
    %p167 = scmp.eq.s32.totalorder %s17, 0
    %p168 = por %p166, %p167
    %p169 = scmp.le.s32.totalorder 1, %s11
    %p170 = scmp.lt.s32.totalorder %s11, 5
    %p171 = pnand %p169, %p170
    %p172 = pneg %p171
    // Predicated region
    $region9: #{quant_inverted_res_block.1} parent=5 // pred_check
      _
    $region10: #{quant_inverted_res_block.1} parent=5 // pred_check_branch
      %174 = sbr.rel (%p171) target = $region12
    $region11: #{quant_inverted_res_block.1} parent=5 // pred_region
      %s175 = ssub.s32 %s11, 1
      // Predicated region
      $region13: #{quant_inverted_res_block.1} parent=11 // pred_check
        %p176 = pneg %p70
      $region14: #{quant_inverted_res_block.1} parent=11 // pred_check_branch
        %178 = sbr.rel (%p176) target = $region16
      $region15: #{quant_inverted_res_block.1} parent=11 // pred_region
        _
      $region16: #{quant_inverted_res_block.1} parent=11 // pred_fallthru
        _
      // Predicated region
      $region17: #{quant_inverted_res_block.1} parent=11 // pred_check
        %p179 = pneg %p91
      $region18: #{quant_inverted_res_block.1} parent=11 // pred_check_branch
        %181 = sbr.rel (%p179) target = $region20
      $region19: #{quant_inverted_res_block.1} parent=11 // pred_region
        _
      $region20: #{quant_inverted_res_block.1} parent=11 // pred_fallthru
        _
      // Predicated region
      $region21: #{quant_inverted_res_block.1} parent=11 // pred_check
        %p182 = pneg %p112
      $region22: #{quant_inverted_res_block.1} parent=11 // pred_check_branch
        %184 = sbr.rel (%p182) target = $region24
      $region23: #{quant_inverted_res_block.1} parent=11 // pred_region
        _
      $region24: #{quant_inverted_res_block.1} parent=11 // pred_fallthru
        _
      // Predicated region
      $region25: #{quant_inverted_res_block.1} parent=11 // pred_check
        %p185 = pneg %p133
      $region26: #{quant_inverted_res_block.1} parent=11 // pred_check_branch
        %187 = sbr.rel (%p185) target = $region28
      $region27: #{quant_inverted_res_block.1} parent=11 // pred_region
        _
      $region28: #{quant_inverted_res_block.1} parent=11 // pred_fallthru
        _
    $region12: #{quant_inverted_res_block.1} parent=5 // pred_fallthru
      _
    %p188 = scmp.lt.s32.totalorder %s11, 4
    // Predicated region
    $region29: #{quant_inverted_res_block.1} parent=5 // pred_check
      %p189 = pneg %p188
    $region30: #{quant_inverted_res_block.1} parent=5 // pred_check_branch
      %191 = sbr.rel (%p189) target = $region32
    $region31: #{quant_inverted_res_block.1} parent=5 // pred_region
      // Predicated region
      $region33: #{quant_inverted_res_block.1} parent=31 // pred_check
        %p192 = pneg %p43
      $region34: #{quant_inverted_res_block.1} parent=31 // pred_check_branch
        %194 = sbr.rel (%p192) target = $region36
      $region35: #{quant_inverted_res_block.1} parent=31 // pred_region
        %p195 = scmp.lt.s32.totalorder %s18, 1
        %s196 = scalar_select %p195, %s18, 1
        %s197 = smul.addr %s196, 32
        %s198 = smul.addr %s197, 4
        %s199 = scalar_lea.vmem %s0, %s198
      $region36: #{quant_inverted_res_block.1} parent=31 // pred_fallthru
        _
    $region32: #{quant_inverted_res_block.1} parent=5 // pred_fallthru
      _
    %p200 = scmp.le.s32.totalorder 1, %s11
    %p201 = scmp.lt.s32.totalorder %s11, 5
    %p202 = pnand %p200, %p201
    %p203 = pneg %p202
    // Predicated region
    $region37: #{quant_inverted_res_block.1} parent=5 // pred_check
      _
    $region38: #{quant_inverted_res_block.1} parent=5 // pred_check_branch
      %205 = sbr.rel (%p202) target = $region40
    $region39: #{quant_inverted_res_block.1} parent=5 // pred_region
      %s206 = ssub.s32 %s11, 1
      %p207 = scmp.lt.s32.totalorder %s20, 1
      %s208 = scalar_select %p207, %s20, 1
      %s209 = smul.addr %s208, 32
      %s210 = smul.addr %s209, 4
      %s211 = scalar_lea.vmem %s0, %s210
      %p212 = pneg %p49
      %p213 = pneg %p46
      %p214 = pneg %p70
      %p215 = pneg %p67
      %p216 = pneg %p91
      %p217 = pneg %p88
      %p218 = pneg %p112
      %p219 = pneg %p109
      %p220 = pneg %p133
      %p221 = pneg %p130
      %p222 = pneg %p161
      %p223 = pneg %p158
      %s224 = smul.u32 16, %s21
      %p225 = scmp.lt.s32.totalorder %s20, 1
      %s226 = scalar_select %p225, %s20, 1
      %p227 = scmp.lt.s32.totalorder %s224, 31
      %s228 = scalar_select %p227, %s224, 31
      %s229 = smul.addr %s226, 32
      %s230 = sadd.s32 %s228, %s229
      %s231 = smul.addr %s230, 4
      %s232 = scalar_lea.vmem %s5, %s231
      %p233 = scmp.lt.s32.totalorder %s20, 1
      %s234 = scalar_select %p233, %s20, 1
      %s235 = smul.addr %s234, 32
      %s236 = smul.addr %s235, 4
      %s237 = scalar_lea.vmem %s0, %s236
      %s238 = smul.u32 16, %s21
      %p239 = scmp.lt.s32.totalorder %s20, 1
      %s240 = scalar_select %p239, %s20, 1
      %p241 = scmp.lt.s32.totalorder %s238, 31
      %s242 = scalar_select %p241, %s238, 31
      %s243 = smul.addr %s240, 32
      %s244 = sadd.s32 %s242, %s243
      %s245 = smul.addr %s244, 4
      %s246 = scalar_lea.vmem %s5, %s245
      %s247 = smul.u32 16, %s21
      %vm249 = vcmask 24576
      %vm250 = vsmask.f32 256
      %vm251 = vmand %vm249, %vm250
      %v252 = vld [vmem:[#allocation2] sm:$0x1]
      %v253 = vsel %vm251, 0, %v252
      %254 = vst [vmem:[#allocation2] sm:$0x1] %v253
      %v255 = vld [vmem:[#allocation2 + $0xc] sm:$0x1]
      %v256 = vsel %vm251, 0, %v255
      %257 = vst [vmem:[#allocation2 + $0xc] sm:$0x1] %v256
      %v258 = vld [vmem:[#allocation2 + $0x18] sm:$0x1]
      %v259 = vsel %vm251, 0, %v258
      %260 = vst [vmem:[#allocation2 + $0x18] sm:$0x1] %v259
      %v261 = vld [vmem:[#allocation2 + $0x24] sm:$0x1]
      %v262 = vsel %vm251, 0, %v261
      %263 = vst [vmem:[#allocation2 + $0x24] sm:$0x1] %v262
      %v264 = vld [vmem:[#allocation2 + $0x30] sm:$0x1]
      %v265 = vsel %vm251, 0, %v264
      %266 = vst [vmem:[#allocation2 + $0x30] sm:$0x1] %v265
      %v267 = vld [vmem:[#allocation2 + $0x3c] sm:$0x1]
      %v268 = vsel %vm251, 0, %v267
      %269 = vst [vmem:[#allocation2 + $0x3c] sm:$0x1] %v268
      %v270 = vld [vmem:[#allocation2 + $0x48] sm:$0x1]
      %v271 = vsel %vm251, 0, %v270
      %272 = vst [vmem:[#allocation2 + $0x48] sm:$0x1] %v271
      %v273 = vld [vmem:[#allocation2 + $0x54] sm:$0x1]
      %v274 = vsel %vm251, 0, %v273
      %275 = vst [vmem:[#allocation2 + $0x54] sm:$0x1] %v274
      %v276 = vld [vmem:[#allocation2 + $0x60] sm:$0x1]
      %v277 = vsel %vm251, 0, %v276
      %278 = vst [vmem:[#allocation2 + $0x60] sm:$0x1] %v277
      %v279 = vld [vmem:[#allocation2 + $0x6c] sm:$0x1]
      %v280 = vsel %vm251, 0, %v279
      %281 = vst [vmem:[#allocation2 + $0x6c] sm:$0x1] %v280
      %vm282 = vsmask.f32 7938
      %vm283 = vmand %vm249, %vm282
      %v284 = vld [vmem:[#allocation2 + $0x8] sm:$0x1]
      %v285 = vsel %vm283, 0, %v284
      %286 = vst [vmem:[#allocation2 + $0x8] sm:$0x1] %v285
      %v287 = vld [vmem:[#allocation2 + $0x14] sm:$0x1]
      %v288 = vsel %vm283, 0, %v287
      %289 = vst [vmem:[#allocation2 + $0x14] sm:$0x1] %v288
      %v290 = vld [vmem:[#allocation2 + $0x20] sm:$0x1]
      %v291 = vsel %vm283, 0, %v290
      %292 = vst [vmem:[#allocation2 + $0x20] sm:$0x1] %v291
      %v293 = vld [vmem:[#allocation2 + $0x2c] sm:$0x1]
      %v294 = vsel %vm283, 0, %v293
      %295 = vst [vmem:[#allocation2 + $0x2c] sm:$0x1] %v294
      %v296 = vld [vmem:[#allocation2 + $0x38] sm:$0x1]
      %v297 = vsel %vm283, 0, %v296
      %298 = vst [vmem:[#allocation2 + $0x38] sm:$0x1] %v297
      %v299 = vld [vmem:[#allocation2 + $0x44] sm:$0x1]
      %v300 = vsel %vm283, 0, %v299
      %301 = vst [vmem:[#allocation2 + $0x44] sm:$0x1] %v300
      %v302 = vld [vmem:[#allocation2 + $0x50] sm:$0x1]
      %v303 = vsel %vm283, 0, %v302
      %304 = vst [vmem:[#allocation2 + $0x50] sm:$0x1] %v303
      %v305 = vld [vmem:[#allocation2 + $0x5c] sm:$0x1]
      %v306 = vsel %vm283, 0, %v305
      %307 = vst [vmem:[#allocation2 + $0x5c] sm:$0x1] %v306
      %v308 = vld [vmem:[#allocation2 + $0x68] sm:$0x1]
      %v309 = vsel %vm283, 0, %v308
      %310 = vst [vmem:[#allocation2 + $0x68] sm:$0x1] %v309
      %v311 = vld [vmem:[#allocation2 + $0x74] sm:$0x1]
      %v312 = vsel %vm283, 0, %v311
      %313 = vst [vmem:[#allocation2 + $0x74] sm:$0x1] %v312
      %s314 = smul.u32 %s21, 8
      %s315 = ssub.s32 %s314, 1
      %p316 = scmp.gt.s32.totalorder %s315, 0
      %s317 = scalar_select %p316, %s315, 0
      %p318 = scmp.lt.s32.totalorder %s317, 6
      %s319 = scalar_select %p318, %s317, 6
      %s320 = smul.u32 %s319, 16
      %s321 = sshra.s32 %s320, 3
      %s322 = sand.u32 %s320, 7
      %s323 = smul.addr %s321, 4
      %s324 = scalar_lea.vmem %s237, %s323
      %v325 = vld [vmem:[%s324] sm:$0xf]
      %v326 = vld [vmem:[%s324 + $0x4] sm:$0xf]
      %v327 = vld [vmem:[%s324 + $0x8] sm:$0xf]
      %v328 = vld [vmem:[%s324 + $0xc] sm:$0xf]
      %v329 = vld [vmem:[%s324 + $0x10] sm:$0xf]
      %v330 = vld [vmem:[%s324 + $0x14] sm:$0xf]
      %v331 = vld [vmem:[%s324 + $0x18] sm:$0xf]
      %v332 = vld [vmem:[%s324 + $0x1c] sm:$0xf]
      %v333 = vld [vmem:[%s324 + $0x20] sm:$0xf]
      %v334 = vld [vmem:[%s324 + $0x24] sm:$0xf]
      %v335 = vld [vmem:[%s324 + $0x28] sm:$0xf]
      %v336 = vld [vmem:[%s324 + $0x2c] sm:$0xf]
      %v337 = vld [vmem:[%s324 + $0x30] sm:$0xf]
      %v338 = vld [vmem:[%s324 + $0x34] sm:$0xf]
      %v339 = vld [vmem:[%s324 + $0x38] sm:$0xf]
      %v340 = vld [vmem:[%s324 + $0x3c] sm:$0xf]
      %v341 = vld [vmem:[%s324 + $0x40] sm:$0xf]
      %v342 = vld [vmem:[%s324 + $0x44] sm:$0xf]
      %v343 = vld [vmem:[%s324 + $0x48] sm:$0xf]
      %v344 = vld [vmem:[%s324 + $0x4c] sm:$0xf]
      %p345 = scmp.eq.s32.totalorder %s21, 0
      // Predicated region
      $region41: #{quant_inverted_res_block.1} parent=39 // pred_check
        %p346 = pneg %p345
      $region42: #{quant_inverted_res_block.1} parent=39 // pred_check_branch
        %348 = sbr.rel (%p346) target = $region44
      $region43: #{quant_inverted_res_block.1} parent=39 // pred_region
        %vm349 = vcmask 27648
        %vm350 = vmand %vm349, %vm282
        %v351 = vld [vmem:[#allocation2] sm:$0xf]
        %v352 = vsel %vm350, 0, %v351
        %353 = vst [vmem:[#allocation2] sm:$0xf] %v352
        %vm354 = vcmask 27648
        %355 = vst.msk [vmem:[#allocation2 + $0x4] sm:$0xf] %vm354, 0
        %v356 = vld [vmem:[#allocation2 + $0x8] sm:$0x1]
        %v357 = vsel %vm251, 0, %v356
        %358 = vst [vmem:[#allocation2 + $0x8] sm:$0x1] %v357
        %vm359 = vsmask.f32 4368
        %vm360 = vmor %vm250, %vm359
        %v362 = vshrl.u32 %v325, 16
        %v364 = vrot.slane %v362, 7
        %v365 = vshll.u32 %v325, 16
        %v367 = vor.u32 %v364, %v365
        %v368 = vrot.slane %v364, 4
        %v370 = vshrl.u32 %v326, 16
        %v372 = vrot.slane %v370, 7
        %v373 = vshll.u32 %v326, 16
        %v375 = vor.u32 %v372, %v373
        %v376 = vsel %vm360, %v368, %v375
        %v377 = vrot.slane %v372, 4
        %v379 = vshrl.u32 %v327, 16
        %v381 = vrot.slane %v379, 7
        %v382 = vshll.u32 %v327, 16
        %v384 = vor.u32 %v381, %v382
        %v385 = vrot.slane %v381, 4
        %v387 = vshrl.u32 %v328, 16
        %v389 = vrot.slane %v387, 7
        %v390 = vshll.u32 %v328, 16
        %v392 = vor.u32 %v389, %v390
        %v393 = vsel %vm360, %v385, %v392
        %v394 = vrot.slane %v389, 4
        %v396 = vshrl.u32 %v329, 16
        %v398 = vrot.slane %v396, 7
        %v399 = vshll.u32 %v329, 16
        %v401 = vor.u32 %v398, %v399
        %v402 = vrot.slane %v398, 4
        %v404 = vshrl.u32 %v330, 16
        %v406 = vrot.slane %v404, 7
        %v407 = vshll.u32 %v330, 16
        %v409 = vor.u32 %v406, %v407
        %v410 = vsel %vm360, %v402, %v409
        %v411 = vrot.slane %v406, 4
        %v413 = vshrl.u32 %v331, 16
        %v415 = vrot.slane %v413, 7
        %v416 = vshll.u32 %v331, 16
        %v418 = vor.u32 %v415, %v416
        %v419 = vrot.slane %v415, 4
        %v421 = vshrl.u32 %v332, 16
        %v423 = vrot.slane %v421, 7
        %v424 = vshll.u32 %v332, 16
        %v426 = vor.u32 %v423, %v424
        %v427 = vsel %vm360, %v419, %v426
        %v428 = vrot.slane %v423, 4
        %v430 = vshrl.u32 %v333, 16
        %v432 = vrot.slane %v430, 7
        %v433 = vshll.u32 %v333, 16
        %v435 = vor.u32 %v432, %v433
        %v436 = vrot.slane %v432, 4
        %v438 = vshrl.u32 %v334, 16
        %v440 = vrot.slane %v438, 7
        %v441 = vshll.u32 %v334, 16
        %v443 = vor.u32 %v440, %v441
        %v444 = vsel %vm360, %v436, %v443
        %v445 = vrot.slane %v440, 4
        %v447 = vshrl.u32 %v335, 16
        %v449 = vrot.slane %v447, 7
        %v450 = vshll.u32 %v335, 16
        %v452 = vor.u32 %v449, %v450
        %v453 = vrot.slane %v449, 4
        %v455 = vshrl.u32 %v336, 16
        %v457 = vrot.slane %v455, 7
        %v458 = vshll.u32 %v336, 16
        %v460 = vor.u32 %v457, %v458
        %v461 = vsel %vm360, %v453, %v460
        %v462 = vrot.slane %v457, 4
        %v464 = vshrl.u32 %v337, 16
        %v466 = vrot.slane %v464, 7
        %v467 = vshll.u32 %v337, 16
        %v469 = vor.u32 %v466, %v467
        %v470 = vrot.slane %v466, 4
        %v472 = vshrl.u32 %v338, 16
        %v474 = vrot.slane %v472, 7
        %v475 = vshll.u32 %v338, 16
        %v477 = vor.u32 %v474, %v475
        %v478 = vsel %vm360, %v470, %v477
        %v479 = vrot.slane %v474, 4
        %v481 = vshrl.u32 %v339, 16
        %v483 = vrot.slane %v481, 7
        %v484 = vshll.u32 %v339, 16
        %v486 = vor.u32 %v483, %v484
        %v487 = vrot.slane %v483, 4
        %v489 = vshrl.u32 %v340, 16
        %v491 = vrot.slane %v489, 7
        %v492 = vshll.u32 %v340, 16
        %v494 = vor.u32 %v491, %v492
        %v495 = vsel %vm360, %v487, %v494
        %v496 = vrot.slane %v491, 4
        %v498 = vshrl.u32 %v341, 16
        %v500 = vrot.slane %v498, 7
        %v501 = vshll.u32 %v341, 16
        %v503 = vor.u32 %v500, %v501
        %v504 = vrot.slane %v500, 4
        %v506 = vshrl.u32 %v342, 16
        %v508 = vrot.slane %v506, 7
        %v509 = vshll.u32 %v342, 16
        %v511 = vor.u32 %v508, %v509
        %v512 = vsel %vm360, %v504, %v511
        %v513 = vrot.slane %v508, 4
        %s541 = scalar_lea.vmem [#allocation2], 12
        %v542 = vld [vmem:[%s541] sm:$0xf]
        %v543 = vsel %vm350, %v367, %v542
        %544 = vst [vmem:[%s541] sm:$0xf] %v543
        %545 = vst.msk [vmem:[%s541 + $0x4] sm:$0xf] %vm354, %v376
        %v546 = vld [vmem:[%s541 + $0x8] sm:$0x1]
        %v547 = vsel %vm251, %v377, %v546
        %548 = vst [vmem:[%s541 + $0x8] sm:$0x1] %v547
        %v549 = vld [vmem:[%s541 + $0xc] sm:$0xf]
        %v550 = vsel %vm350, %v384, %v549
        %551 = vst [vmem:[%s541 + $0xc] sm:$0xf] %v550
        %552 = vst.msk [vmem:[%s541 + $0x10] sm:$0xf] %vm354, %v393
        %v553 = vld [vmem:[%s541 + $0x14] sm:$0x1]
        %v554 = vsel %vm251, %v394, %v553
        %555 = vst [vmem:[%s541 + $0x14] sm:$0x1] %v554
        %v556 = vld [vmem:[%s541 + $0x18] sm:$0xf]
        %v557 = vsel %vm350, %v401, %v556
        %558 = vst [vmem:[%s541 + $0x18] sm:$0xf] %v557
        %559 = vst.msk [vmem:[%s541 + $0x1c] sm:$0xf] %vm354, %v410
        %v560 = vld [vmem:[%s541 + $0x20] sm:$0x1]
        %v561 = vsel %vm251, %v411, %v560
        %562 = vst [vmem:[%s541 + $0x20] sm:$0x1] %v561
        %v563 = vld [vmem:[%s541 + $0x24] sm:$0xf]
        %v564 = vsel %vm350, %v418, %v563
        %565 = vst [vmem:[%s541 + $0x24] sm:$0xf] %v564
        %566 = vst.msk [vmem:[%s541 + $0x28] sm:$0xf] %vm354, %v427
        %v567 = vld [vmem:[%s541 + $0x2c] sm:$0x1]
        %v568 = vsel %vm251, %v428, %v567
        %569 = vst [vmem:[%s541 + $0x2c] sm:$0x1] %v568
        %v570 = vld [vmem:[%s541 + $0x30] sm:$0xf]
        %v571 = vsel %vm350, %v435, %v570
        %572 = vst [vmem:[%s541 + $0x30] sm:$0xf] %v571
        %573 = vst.msk [vmem:[%s541 + $0x34] sm:$0xf] %vm354, %v444
        %v574 = vld [vmem:[%s541 + $0x38] sm:$0x1]
        %v575 = vsel %vm251, %v445, %v574
        %576 = vst [vmem:[%s541 + $0x38] sm:$0x1] %v575
        %v577 = vld [vmem:[%s541 + $0x3c] sm:$0xf]
        %v578 = vsel %vm350, %v452, %v577
        %579 = vst [vmem:[%s541 + $0x3c] sm:$0xf] %v578
        %580 = vst.msk [vmem:[%s541 + $0x40] sm:$0xf] %vm354, %v461
        %v581 = vld [vmem:[%s541 + $0x44] sm:$0x1]
        %v582 = vsel %vm251, %v462, %v581
        %583 = vst [vmem:[%s541 + $0x44] sm:$0x1] %v582
        %v584 = vld [vmem:[%s541 + $0x48] sm:$0xf]
        %v585 = vsel %vm350, %v469, %v584
        %586 = vst [vmem:[%s541 + $0x48] sm:$0xf] %v585
        %587 = vst.msk [vmem:[%s541 + $0x4c] sm:$0xf] %vm354, %v478
        %v588 = vld [vmem:[%s541 + $0x50] sm:$0x1]
        %v589 = vsel %vm251, %v479, %v588
        %590 = vst [vmem:[%s541 + $0x50] sm:$0x1] %v589
        %v591 = vld [vmem:[%s541 + $0x54] sm:$0xf]
        %v592 = vsel %vm350, %v486, %v591
        %593 = vst [vmem:[%s541 + $0x54] sm:$0xf] %v592
        %594 = vst.msk [vmem:[%s541 + $0x58] sm:$0xf] %vm354, %v495
        %v595 = vld [vmem:[%s541 + $0x5c] sm:$0x1]
        %v596 = vsel %vm251, %v496, %v595
        %597 = vst [vmem:[%s541 + $0x5c] sm:$0x1] %v596
        %v598 = vld [vmem:[%s541 + $0x60] sm:$0xf]
        %v599 = vsel %vm350, %v503, %v598
        %600 = vst [vmem:[%s541 + $0x60] sm:$0xf] %v599
        %601 = vst.msk [vmem:[%s541 + $0x64] sm:$0xf] %vm354, %v512
        %v602 = vld [vmem:[%s541 + $0x68] sm:$0x1]
        %v603 = vsel %vm251, %v513, %v602
        %604 = vst [vmem:[%s541 + $0x68] sm:$0x1] %v603
      $region44: #{quant_inverted_res_block.1} parent=39 // pred_fallthru
        _
      %p605 = scmp.eq.s32.totalorder %s21, 1
      // Predicated region
      $region45: #{quant_inverted_res_block.1} parent=39 // pred_check
        %p606 = pneg %p605
      $region46: #{quant_inverted_res_block.1} parent=39 // pred_check_branch
        %608 = sbr.rel (%p606) target = $region48
      $region47: #{quant_inverted_res_block.1} parent=39 // pred_region
        %vm609 = vsmask.f32 4368
        %vm610 = vmor %vm250, %vm609
        %v612 = vshrl.u32 %v327, 16
        %v614 = vrot.slane %v612, 7
        %v615 = vshll.u32 %v327, 16
        %v617 = vor.u32 %v614, %v615
        %v618 = vrot.slane %v614, 4
        %v620 = vshrl.u32 %v328, 16
        %v622 = vrot.slane %v620, 7
        %v623 = vshll.u32 %v328, 16
        %v625 = vor.u32 %v622, %v623
        %v626 = vsel %vm610, %v618, %v625
        %v627 = vrot.slane %v622, 4
        %v629 = vshrl.u32 %v329, 16
        %v631 = vrot.slane %v629, 7
        %v632 = vshll.u32 %v329, 16
        %v634 = vor.u32 %v631, %v632
        %v635 = vrot.slane %v631, 4
        %v637 = vshrl.u32 %v330, 16
        %v639 = vrot.slane %v637, 7
        %v640 = vshll.u32 %v330, 16
        %v642 = vor.u32 %v639, %v640
        %v643 = vsel %vm610, %v635, %v642
        %v644 = vrot.slane %v639, 4
        %v646 = vshrl.u32 %v331, 16
        %v648 = vrot.slane %v646, 7
        %v649 = vshll.u32 %v331, 16
        %v651 = vor.u32 %v648, %v649
        %v652 = vrot.slane %v648, 4
        %v654 = vshrl.u32 %v332, 16
        %v656 = vrot.slane %v654, 7
        %v657 = vshll.u32 %v332, 16
        %v659 = vor.u32 %v656, %v657
        %v660 = vsel %vm610, %v652, %v659
        %v661 = vrot.slane %v656, 4
        %v663 = vshrl.u32 %v333, 16
        %v665 = vrot.slane %v663, 7
        %v666 = vshll.u32 %v333, 16
        %v668 = vor.u32 %v665, %v666
        %v669 = vrot.slane %v665, 4
        %v671 = vshrl.u32 %v334, 16
        %v673 = vrot.slane %v671, 7
        %v674 = vshll.u32 %v334, 16
        %v676 = vor.u32 %v673, %v674
        %v677 = vsel %vm610, %v669, %v676
        %v678 = vrot.slane %v673, 4
        %v680 = vshrl.u32 %v335, 16
        %v682 = vrot.slane %v680, 7
        %v683 = vshll.u32 %v335, 16
        %v685 = vor.u32 %v682, %v683
        %v686 = vrot.slane %v682, 4
        %v688 = vshrl.u32 %v336, 16
        %v690 = vrot.slane %v688, 7
        %v691 = vshll.u32 %v336, 16
        %v693 = vor.u32 %v690, %v691
        %v694 = vsel %vm610, %v686, %v693
        %v695 = vrot.slane %v690, 4
        %v697 = vshrl.u32 %v337, 16
        %v699 = vrot.slane %v697, 7
        %v700 = vshll.u32 %v337, 16
        %v702 = vor.u32 %v699, %v700
        %v703 = vrot.slane %v699, 4
        %v705 = vshrl.u32 %v338, 16
        %v707 = vrot.slane %v705, 7
        %v708 = vshll.u32 %v338, 16
        %v710 = vor.u32 %v707, %v708
        %v711 = vsel %vm610, %v703, %v710
        %v712 = vrot.slane %v707, 4
        %v714 = vshrl.u32 %v339, 16
        %v716 = vrot.slane %v714, 7
        %v717 = vshll.u32 %v339, 16
        %v719 = vor.u32 %v716, %v717
        %v720 = vrot.slane %v716, 4
        %v722 = vshrl.u32 %v340, 16
        %v724 = vrot.slane %v722, 7
        %v725 = vshll.u32 %v340, 16
        %v727 = vor.u32 %v724, %v725
        %v728 = vsel %vm610, %v720, %v727
        %v729 = vrot.slane %v724, 4
        %v731 = vshrl.u32 %v341, 16
        %v733 = vrot.slane %v731, 7
        %v734 = vshll.u32 %v341, 16
        %v736 = vor.u32 %v733, %v734
        %v737 = vrot.slane %v733, 4
        %v739 = vshrl.u32 %v342, 16
        %v741 = vrot.slane %v739, 7
        %v742 = vshll.u32 %v342, 16
        %v744 = vor.u32 %v741, %v742
        %v745 = vsel %vm610, %v737, %v744
        %v746 = vrot.slane %v741, 4
        %v748 = vshrl.u32 %v343, 16
        %v750 = vrot.slane %v748, 7
        %v751 = vshll.u32 %v343, 16
        %v753 = vor.u32 %v750, %v751
        %v754 = vrot.slane %v750, 4
        %v756 = vshrl.u32 %v344, 16
        %v758 = vrot.slane %v756, 7
        %v759 = vshll.u32 %v344, 16
        %v761 = vor.u32 %v758, %v759
        %v762 = vsel %vm610, %v754, %v761
        %v763 = vrot.slane %v758, 4
        %vm791 = vcmask 27648
        %vm792 = vmand %vm791, %vm282
        %v793 = vld [vmem:[#allocation2] sm:$0xf]
        %v794 = vsel %vm792, %v617, %v793
        %795 = vst [vmem:[#allocation2] sm:$0xf] %v794
        %vm796 = vcmask 27648
        %797 = vst.msk [vmem:[#allocation2 + $0x4] sm:$0xf] %vm796, %v626
        %v798 = vld [vmem:[#allocation2 + $0x8] sm:$0x1]
        %v799 = vsel %vm251, %v627, %v798
        %800 = vst [vmem:[#allocation2 + $0x8] sm:$0x1] %v799
        %v801 = vld [vmem:[#allocation2 + $0xc] sm:$0xf]
        %v802 = vsel %vm792, %v634, %v801
        %803 = vst [vmem:[#allocation2 + $0xc] sm:$0xf] %v802
        %804 = vst.msk [vmem:[#allocation2 + $0x10] sm:$0xf] %vm796, %v643
        %v805 = vld [vmem:[#allocation2 + $0x14] sm:$0x1]
        %v806 = vsel %vm251, %v644, %v805
        %807 = vst [vmem:[#allocation2 + $0x14] sm:$0x1] %v806
        %v808 = vld [vmem:[#allocation2 + $0x18] sm:$0xf]
        %v809 = vsel %vm792, %v651, %v808
        %810 = vst [vmem:[#allocation2 + $0x18] sm:$0xf] %v809
        %811 = vst.msk [vmem:[#allocation2 + $0x1c] sm:$0xf] %vm796, %v660
        %v812 = vld [vmem:[#allocation2 + $0x20] sm:$0x1]
        %v813 = vsel %vm251, %v661, %v812
        %814 = vst [vmem:[#allocation2 + $0x20] sm:$0x1] %v813
        %v815 = vld [vmem:[#allocation2 + $0x24] sm:$0xf]
        %v816 = vsel %vm792, %v668, %v815
        %817 = vst [vmem:[#allocation2 + $0x24] sm:$0xf] %v816
        %818 = vst.msk [vmem:[#allocation2 + $0x28] sm:$0xf] %vm796, %v677
        %v819 = vld [vmem:[#allocation2 + $0x2c] sm:$0x1]
        %v820 = vsel %vm251, %v678, %v819
        %821 = vst [vmem:[#allocation2 + $0x2c] sm:$0x1] %v820
        %v822 = vld [vmem:[#allocation2 + $0x30] sm:$0xf]
        %v823 = vsel %vm792, %v685, %v822
        %824 = vst [vmem:[#allocation2 + $0x30] sm:$0xf] %v823
        %825 = vst.msk [vmem:[#allocation2 + $0x34] sm:$0xf] %vm796, %v694
        %v826 = vld [vmem:[#allocation2 + $0x38] sm:$0x1]
        %v827 = vsel %vm251, %v695, %v826
        %828 = vst [vmem:[#allocation2 + $0x38] sm:$0x1] %v827
        %v829 = vld [vmem:[#allocation2 + $0x3c] sm:$0xf]
        %v830 = vsel %vm792, %v702, %v829
        %831 = vst [vmem:[#allocation2 + $0x3c] sm:$0xf] %v830
        %832 = vst.msk [vmem:[#allocation2 + $0x40] sm:$0xf] %vm796, %v711
        %v833 = vld [vmem:[#allocation2 + $0x44] sm:$0x1]
        %v834 = vsel %vm251, %v712, %v833
        %835 = vst [vmem:[#allocation2 + $0x44] sm:$0x1] %v834
        %v836 = vld [vmem:[#allocation2 + $0x48] sm:$0xf]
        %v837 = vsel %vm792, %v719, %v836
        %838 = vst [vmem:[#allocation2 + $0x48] sm:$0xf] %v837
        %839 = vst.msk [vmem:[#allocation2 + $0x4c] sm:$0xf] %vm796, %v728
        %v840 = vld [vmem:[#allocation2 + $0x50] sm:$0x1]
        %v841 = vsel %vm251, %v729, %v840
        %842 = vst [vmem:[#allocation2 + $0x50] sm:$0x1] %v841
        %v843 = vld [vmem:[#allocation2 + $0x54] sm:$0xf]
        %v844 = vsel %vm792, %v736, %v843
        %845 = vst [vmem:[#allocation2 + $0x54] sm:$0xf] %v844
        %846 = vst.msk [vmem:[#allocation2 + $0x58] sm:$0xf] %vm796, %v745
        %v847 = vld [vmem:[#allocation2 + $0x5c] sm:$0x1]
        %v848 = vsel %vm251, %v746, %v847
        %849 = vst [vmem:[#allocation2 + $0x5c] sm:$0x1] %v848
        %v850 = vld [vmem:[#allocation2 + $0x60] sm:$0xf]
        %v851 = vsel %vm792, %v753, %v850
        %852 = vst [vmem:[#allocation2 + $0x60] sm:$0xf] %v851
        %853 = vst.msk [vmem:[#allocation2 + $0x64] sm:$0xf] %vm796, %v762
        %v854 = vld [vmem:[#allocation2 + $0x68] sm:$0x1]
        %v855 = vsel %vm251, %v763, %v854
        %856 = vst [vmem:[#allocation2 + $0x68] sm:$0x1] %v855
        %s857 = scalar_lea.vmem [#allocation2], 108
        %v858 = vld [vmem:[%s857] sm:$0xf]
        %v859 = vsel %vm792, 0, %v858
        %860 = vst [vmem:[%s857] sm:$0xf] %v859
        %861 = vst.msk [vmem:[%s857 + $0x4] sm:$0xf] %vm796, 0
        %v862 = vld [vmem:[%s857 + $0x8] sm:$0x1]
        %v863 = vsel %vm251, 0, %v862
        %864 = vst [vmem:[%s857 + $0x8] sm:$0x1] %v863
      $region48: #{quant_inverted_res_block.1} parent=39 // pred_fallthru
        _
      %p865 = scmp.gt.s32.totalorder %s21, 0
      %p866 = scmp.lt.s32.totalorder %s21, 1
      %p867 = pnand %p865, %p866
      %p868 = pneg %p867
      // Predicated region
      $region49: #{quant_inverted_res_block.1} parent=39 // pred_check
        _
      $region50: #{quant_inverted_res_block.1} parent=39 // pred_check_branch
        %870 = sbr.rel (%p867) target = $region52
      $region51: #{quant_inverted_res_block.1} parent=39 // pred_region
        %vm871 = vsmask.f32 4368
        %vm872 = vmor %vm250, %vm871
        %v874 = vshrl.u32 %v325, 16
        %v876 = vrot.slane %v874, 7
        %v877 = vshll.u32 %v325, 16
        %v879 = vor.u32 %v876, %v877
        %v880 = vrot.slane %v876, 4
        %v882 = vshrl.u32 %v326, 16
        %v884 = vrot.slane %v882, 7
        %v885 = vshll.u32 %v326, 16
        %v887 = vor.u32 %v884, %v885
        %v888 = vsel %vm872, %v880, %v887
        %v889 = vrot.slane %v884, 4
        %v891 = vshrl.u32 %v327, 16
        %v893 = vrot.slane %v891, 7
        %v894 = vshll.u32 %v327, 16
        %v896 = vor.u32 %v893, %v894
        %v897 = vrot.slane %v893, 4
        %v899 = vshrl.u32 %v328, 16
        %v901 = vrot.slane %v899, 7
        %v902 = vshll.u32 %v328, 16
        %v904 = vor.u32 %v901, %v902
        %v905 = vsel %vm872, %v897, %v904
        %v906 = vrot.slane %v901, 4
        %v908 = vshrl.u32 %v329, 16
        %v910 = vrot.slane %v908, 7
        %v911 = vshll.u32 %v329, 16
        %v913 = vor.u32 %v910, %v911
        %v914 = vrot.slane %v910, 4
        %v916 = vshrl.u32 %v330, 16
        %v918 = vrot.slane %v916, 7
        %v919 = vshll.u32 %v330, 16
        %v921 = vor.u32 %v918, %v919
        %v922 = vsel %vm872, %v914, %v921
        %v923 = vrot.slane %v918, 4
        %v925 = vshrl.u32 %v331, 16
        %v927 = vrot.slane %v925, 7
        %v928 = vshll.u32 %v331, 16
        %v930 = vor.u32 %v927, %v928
        %v931 = vrot.slane %v927, 4
        %v933 = vshrl.u32 %v332, 16
        %v935 = vrot.slane %v933, 7
        %v936 = vshll.u32 %v332, 16
        %v938 = vor.u32 %v935, %v936
        %v939 = vsel %vm872, %v931, %v938
        %v940 = vrot.slane %v935, 4
        %v942 = vshrl.u32 %v333, 16
        %v944 = vrot.slane %v942, 7
        %v945 = vshll.u32 %v333, 16
        %v947 = vor.u32 %v944, %v945
        %v948 = vrot.slane %v944, 4
        %v950 = vshrl.u32 %v334, 16
        %v952 = vrot.slane %v950, 7
        %v953 = vshll.u32 %v334, 16
        %v955 = vor.u32 %v952, %v953
        %v956 = vsel %vm872, %v948, %v955
        %v957 = vrot.slane %v952, 4
        %v959 = vshrl.u32 %v335, 16
        %v961 = vrot.slane %v959, 7
        %v962 = vshll.u32 %v335, 16
        %v964 = vor.u32 %v961, %v962
        %v965 = vrot.slane %v961, 4
        %v967 = vshrl.u32 %v336, 16
        %v969 = vrot.slane %v967, 7
        %v970 = vshll.u32 %v336, 16
        %v972 = vor.u32 %v969, %v970
        %v973 = vsel %vm872, %v965, %v972
        %v974 = vrot.slane %v969, 4
        %v976 = vshrl.u32 %v337, 16
        %v978 = vrot.slane %v976, 7
        %v979 = vshll.u32 %v337, 16
        %v981 = vor.u32 %v978, %v979
        %v982 = vrot.slane %v978, 4
        %v984 = vshrl.u32 %v338, 16
        %v986 = vrot.slane %v984, 7
        %v987 = vshll.u32 %v338, 16
        %v989 = vor.u32 %v986, %v987
        %v990 = vsel %vm872, %v982, %v989
        %v991 = vrot.slane %v986, 4
        %v993 = vshrl.u32 %v339, 16
        %v995 = vrot.slane %v993, 7
        %v996 = vshll.u32 %v339, 16
        %v998 = vor.u32 %v995, %v996
        %v999 = vrot.slane %v995, 4
        %v1001 = vshrl.u32 %v340, 16
        %v1003 = vrot.slane %v1001, 7
        %v1004 = vshll.u32 %v340, 16
        %v1006 = vor.u32 %v1003, %v1004
        %v1007 = vsel %vm872, %v999, %v1006
        %v1008 = vrot.slane %v1003, 4
        %v1010 = vshrl.u32 %v341, 16
        %v1012 = vrot.slane %v1010, 7
        %v1013 = vshll.u32 %v341, 16
        %v1015 = vor.u32 %v1012, %v1013
        %v1016 = vrot.slane %v1012, 4
        %v1018 = vshrl.u32 %v342, 16
        %v1020 = vrot.slane %v1018, 7
        %v1021 = vshll.u32 %v342, 16
        %v1023 = vor.u32 %v1020, %v1021
        %v1024 = vsel %vm872, %v1016, %v1023
        %v1025 = vrot.slane %v1020, 4
        %v1027 = vshrl.u32 %v343, 16
        %v1029 = vrot.slane %v1027, 7
        %v1030 = vshll.u32 %v343, 16
        %v1032 = vor.u32 %v1029, %v1030
        %v1033 = vrot.slane %v1029, 4
        %v1035 = vshrl.u32 %v344, 16
        %v1037 = vrot.slane %v1035, 7
        %v1038 = vshll.u32 %v344, 16
        %v1040 = vor.u32 %v1037, %v1038
        %v1041 = vsel %vm872, %v1033, %v1040
        %v1042 = vrot.slane %v1037, 4
        %vm1073 = vcmask 27648
        %vm1074 = vmand %vm1073, %vm282
        %v1075 = vld [vmem:[#allocation2] sm:$0xf]
        %v1076 = vsel %vm1074, %v879, %v1075
        %1077 = vst [vmem:[#allocation2] sm:$0xf] %v1076
        %vm1078 = vcmask 27648
        %1079 = vst.msk [vmem:[#allocation2 + $0x4] sm:$0xf] %vm1078, %v888
        %v1080 = vld [vmem:[#allocation2 + $0x8] sm:$0x1]
        %v1081 = vsel %vm251, %v889, %v1080
        %1082 = vst [vmem:[#allocation2 + $0x8] sm:$0x1] %v1081
        %v1083 = vld [vmem:[#allocation2 + $0xc] sm:$0xf]
        %v1084 = vsel %vm1074, %v896, %v1083
        %1085 = vst [vmem:[#allocation2 + $0xc] sm:$0xf] %v1084
        %1086 = vst.msk [vmem:[#allocation2 + $0x10] sm:$0xf] %vm1078, %v905
        %v1087 = vld [vmem:[#allocation2 + $0x14] sm:$0x1]
        %v1088 = vsel %vm251, %v906, %v1087
        %1089 = vst [vmem:[#allocation2 + $0x14] sm:$0x1] %v1088
        %v1090 = vld [vmem:[#allocation2 + $0x18] sm:$0xf]
        %v1091 = vsel %vm1074, %v913, %v1090
        %1092 = vst [vmem:[#allocation2 + $0x18] sm:$0xf] %v1091
        %1093 = vst.msk [vmem:[#allocation2 + $0x1c] sm:$0xf] %vm1078, %v922
        %v1094 = vld [vmem:[#allocation2 + $0x20] sm:$0x1]
        %v1095 = vsel %vm251, %v923, %v1094
        %1096 = vst [vmem:[#allocation2 + $0x20] sm:$0x1] %v1095
        %v1097 = vld [vmem:[#allocation2 + $0x24] sm:$0xf]
        %v1098 = vsel %vm1074, %v930, %v1097
        %1099 = vst [vmem:[#allocation2 + $0x24] sm:$0xf] %v1098
        %1100 = vst.msk [vmem:[#allocation2 + $0x28] sm:$0xf] %vm1078, %v939
        %v1101 = vld [vmem:[#allocation2 + $0x2c] sm:$0x1]
        %v1102 = vsel %vm251, %v940, %v1101
        %1103 = vst [vmem:[#allocation2 + $0x2c] sm:$0x1] %v1102
        %v1104 = vld [vmem:[#allocation2 + $0x30] sm:$0xf]
        %v1105 = vsel %vm1074, %v947, %v1104
        %1106 = vst [vmem:[#allocation2 + $0x30] sm:$0xf] %v1105
        %1107 = vst.msk [vmem:[#allocation2 + $0x34] sm:$0xf] %vm1078, %v956
        %v1108 = vld [vmem:[#allocation2 + $0x38] sm:$0x1]
        %v1109 = vsel %vm251, %v957, %v1108
        %1110 = vst [vmem:[#allocation2 + $0x38] sm:$0x1] %v1109
        %v1111 = vld [vmem:[#allocation2 + $0x3c] sm:$0xf]
        %v1112 = vsel %vm1074, %v964, %v1111
        %1113 = vst [vmem:[#allocation2 + $0x3c] sm:$0xf] %v1112
        %1114 = vst.msk [vmem:[#allocation2 + $0x40] sm:$0xf] %vm1078, %v973
        %v1115 = vld [vmem:[#allocation2 + $0x44] sm:$0x1]
        %v1116 = vsel %vm251, %v974, %v1115
        %1117 = vst [vmem:[#allocation2 + $0x44] sm:$0x1] %v1116
        %v1118 = vld [vmem:[#allocation2 + $0x48] sm:$0xf]
        %v1119 = vsel %vm1074, %v981, %v1118
        %1120 = vst [vmem:[#allocation2 + $0x48] sm:$0xf] %v1119
        %1121 = vst.msk [vmem:[#allocation2 + $0x4c] sm:$0xf] %vm1078, %v990
        %v1122 = vld [vmem:[#allocation2 + $0x50] sm:$0x1]
        %v1123 = vsel %vm251, %v991, %v1122
        %1124 = vst [vmem:[#allocation2 + $0x50] sm:$0x1] %v1123
        %v1125 = vld [vmem:[#allocation2 + $0x54] sm:$0xf]
        %v1126 = vsel %vm1074, %v998, %v1125
        %1127 = vst [vmem:[#allocation2 + $0x54] sm:$0xf] %v1126
        %1128 = vst.msk [vmem:[#allocation2 + $0x58] sm:$0xf] %vm1078, %v1007
        %v1129 = vld [vmem:[#allocation2 + $0x5c] sm:$0x1]
        %v1130 = vsel %vm251, %v1008, %v1129
        %1131 = vst [vmem:[#allocation2 + $0x5c] sm:$0x1] %v1130
        %v1132 = vld [vmem:[#allocation2 + $0x60] sm:$0xf]
        %v1133 = vsel %vm1074, %v1015, %v1132
        %1134 = vst [vmem:[#allocation2 + $0x60] sm:$0xf] %v1133
        %1135 = vst.msk [vmem:[#allocation2 + $0x64] sm:$0xf] %vm1078, %v1024
        %v1136 = vld [vmem:[#allocation2 + $0x68] sm:$0x1]
        %v1137 = vsel %vm251, %v1025, %v1136
        %1138 = vst [vmem:[#allocation2 + $0x68] sm:$0x1] %v1137
        %v1139 = vld [vmem:[#allocation2 + $0x6c] sm:$0xf]
        %v1140 = vsel %vm1074, %v1032, %v1139
        %1141 = vst [vmem:[#allocation2 + $0x6c] sm:$0xf] %v1140
        %1142 = vst.msk [vmem:[#allocation2 + $0x70] sm:$0xf] %vm1078, %v1041
        %v1143 = vld [vmem:[#allocation2 + $0x74] sm:$0x1]
        %v1144 = vsel %vm251, %v1042, %v1143
        %1145 = vst [vmem:[#allocation2 + $0x74] sm:$0x1] %v1144
      $region52: #{quant_inverted_res_block.1} parent=39 // pred_fallthru
        _
      %v1146 = vld [vmem:[%s2] sm:$0x1]
      %v1148 = vlaneseq
      %v1149 = vshrl.u32 %v1148, 7
      %v1150 = vsub.s32 0, %v1149
      %v1151 = vrot.slane %v1146, %v1150
      %v1153 = vld [vmem:[#allocation2] sm:$0xf]
      %v1154 = vld [vmem:[#allocation2 + $0x4] sm:$0xf]
      %v1155 = vld [vmem:[#allocation2 + $0xc] sm:$0xf]
      %v1156 = vld [vmem:[#allocation2 + $0x10] sm:$0xf]
      %v1157 = vld [vmem:[#allocation2 + $0x18] sm:$0xf]
      %v1158 = vld [vmem:[#allocation2 + $0x1c] sm:$0xf]
      %v1159 = vld [vmem:[#allocation2 + $0x24] sm:$0xf]
      %v1160 = vld [vmem:[#allocation2 + $0x28] sm:$0xf]
      %v1161 = vld [vmem:[#allocation2 + $0x30] sm:$0xf]
      %v1162 = vld [vmem:[#allocation2 + $0x34] sm:$0xf]
      %v1163 = vld [vmem:[#allocation2 + $0x3c] sm:$0xf]
      %v1164 = vld [vmem:[#allocation2 + $0x40] sm:$0xf]
      %v1165 = vld [vmem:[#allocation2 + $0x48] sm:$0xf]
      %v1166 = vld [vmem:[#allocation2 + $0x4c] sm:$0xf]
      %v1167 = vld [vmem:[#allocation2 + $0x54] sm:$0xf]
      %v1168 = vld [vmem:[#allocation2 + $0x58] sm:$0xf]
      %v1169 = vunpack.c.l.bf16 %v1153
      %v1170 = vunpack.c.l.bf16 %v1154
      %v1171 = vunpack.c.l.bf16 %v1155
      %v1172 = vunpack.c.l.bf16 %v1156
      %v1173 = vunpack.c.l.bf16 %v1157
      %v1174 = vunpack.c.l.bf16 %v1158
      %v1175 = vunpack.c.l.bf16 %v1159
      %v1176 = vunpack.c.l.bf16 %v1160
      %v1177 = vunpack.c.l.bf16 %v1161
      %v1178 = vunpack.c.l.bf16 %v1162
      %v1179 = vunpack.c.l.bf16 %v1163
      %v1180 = vunpack.c.l.bf16 %v1164
      %v1181 = vunpack.c.l.bf16 %v1165
      %v1182 = vunpack.c.l.bf16 %v1166
      %v1183 = vunpack.c.l.bf16 %v1167
      %v1184 = vunpack.c.l.bf16 %v1168
      %v1185 = vld [vmem:[%s1] sm:$0x1]
      %v1186 = vlaneseq
      %v1187 = vshrl.u32 %v1186, 7
      %v1188 = vsub.s32 0, %v1187
      %v1189 = vrot.slane %v1185, %v1188
      %v1190 = vmul.f32 %v1169, %v1189
      %v1191 = vmul.f32 %v1170, %v1189
      %v1192 = vmul.f32 %v1171, %v1189
      %v1193 = vmul.f32 %v1172, %v1189
      %v1194 = vmul.f32 %v1173, %v1189
      %v1195 = vmul.f32 %v1174, %v1189
      %v1196 = vmul.f32 %v1175, %v1189
      %v1197 = vmul.f32 %v1176, %v1189
      %v1198 = vmul.f32 %v1177, %v1189
      %v1199 = vmul.f32 %v1178, %v1189
      %v1200 = vmul.f32 %v1179, %v1189
      %v1201 = vmul.f32 %v1180, %v1189
      %v1202 = vmul.f32 %v1181, %v1189
      %v1203 = vmul.f32 %v1182, %v1189
      %v1204 = vmul.f32 %v1183, %v1189
      %v1205 = vmul.f32 %v1184, %v1189
      %v1206 = vadd.f32 %v1151, %v1190
      %v1207 = vadd.f32 %v1151, %v1191
      %v1208 = vadd.f32 %v1151, %v1192
      %v1209 = vadd.f32 %v1151, %v1193
      %v1210 = vadd.f32 %v1151, %v1194
      %v1211 = vadd.f32 %v1151, %v1195
      %v1212 = vadd.f32 %v1151, %v1196
      %v1213 = vadd.f32 %v1151, %v1197
      %v1214 = vadd.f32 %v1151, %v1198
      %v1215 = vadd.f32 %v1151, %v1199
      %v1216 = vadd.f32 %v1151, %v1200
      %v1217 = vadd.f32 %v1151, %v1201
      %v1218 = vadd.f32 %v1151, %v1202
      %v1219 = vadd.f32 %v1151, %v1203
      %v1220 = vadd.f32 %v1151, %v1204
      %v1221 = vadd.f32 %v1151, %v1205
      %v1222 = vld [vmem:[#allocation2 + $0x8] sm:$0x1]
      %v1223 = vld [vmem:[#allocation2 + $0x14] sm:$0x1]
      %v1224 = vld [vmem:[#allocation2 + $0x20] sm:$0x1]
      %v1225 = vld [vmem:[#allocation2 + $0x2c] sm:$0x1]
      %v1226 = vld [vmem:[#allocation2 + $0x38] sm:$0x1]
      %v1227 = vld [vmem:[#allocation2 + $0x44] sm:$0x1]
      %v1228 = vld [vmem:[#allocation2 + $0x50] sm:$0x1]
      %v1229 = vld [vmem:[#allocation2 + $0x5c] sm:$0x1]
      %v1230 = vunpack.c.l.bf16 %v1222
      %v1231 = vunpack.c.l.bf16 %v1223
      %v1232 = vunpack.c.l.bf16 %v1224
      %v1233 = vunpack.c.l.bf16 %v1225
      %v1234 = vunpack.c.l.bf16 %v1226
      %v1235 = vunpack.c.l.bf16 %v1227
      %v1236 = vunpack.c.l.bf16 %v1228
      %v1237 = vunpack.c.l.bf16 %v1229
      %v1238 = vld [vmem:[%s1 + $0x1] sm:$0x1]
      %v1239 = vlaneseq
      %v1240 = vshrl.u32 %v1239, 7
      %v1241 = vsub.s32 0, %v1240
      %v1242 = vrot.slane %v1238, %v1241
      %v1243 = vmul.f32 %v1169, %v1242
      %v1244 = vmul.f32 %v1170, %v1242
      %v1245 = vmul.f32 %v1230, %v1242
      %v1246 = vmul.f32 %v1171, %v1242
      %v1247 = vmul.f32 %v1172, %v1242
      %v1248 = vmul.f32 %v1231, %v1242
      %v1249 = vmul.f32 %v1173, %v1242
      %v1250 = vmul.f32 %v1174, %v1242
      %v1251 = vmul.f32 %v1232, %v1242
      %v1252 = vmul.f32 %v1175, %v1242
      %v1253 = vmul.f32 %v1176, %v1242
      %v1254 = vmul.f32 %v1233, %v1242
      %v1255 = vmul.f32 %v1177, %v1242
      %v1256 = vmul.f32 %v1178, %v1242
      %v1257 = vmul.f32 %v1234, %v1242
      %v1258 = vmul.f32 %v1179, %v1242
      %v1259 = vmul.f32 %v1180, %v1242
      %v1260 = vmul.f32 %v1235, %v1242
      %v1261 = vmul.f32 %v1181, %v1242
      %v1262 = vmul.f32 %v1182, %v1242
      %v1263 = vmul.f32 %v1236, %v1242
      %v1264 = vmul.f32 %v1183, %v1242
      %v1265 = vmul.f32 %v1184, %v1242
      %v1266 = vmul.f32 %v1237, %v1242
      %vm1291 = vcmask 1046528
      %v1292 = vrot.slane %v1243, 1
      %v1293 = vrot.slane %v1244, 1
      %v1294 = vsel %vm1291, %v1292, %v1293
      %v1295 = vrot.slane %v1245, 1
      %v1296 = vsel %vm1291, %v1293, %v1295
      %v1297 = vrot.slane %v1246, 1
      %v1298 = vrot.slane %v1247, 1
      %v1299 = vsel %vm1291, %v1297, %v1298
      %v1300 = vrot.slane %v1248, 1
      %v1301 = vsel %vm1291, %v1298, %v1300
      %v1302 = vrot.slane %v1249, 1
      %v1303 = vrot.slane %v1250, 1
      %v1304 = vsel %vm1291, %v1302, %v1303
      %v1305 = vrot.slane %v1251, 1
      %v1306 = vsel %vm1291, %v1303, %v1305
      %v1307 = vrot.slane %v1252, 1
      %v1308 = vrot.slane %v1253, 1
      %v1309 = vsel %vm1291, %v1307, %v1308
      %v1310 = vrot.slane %v1254, 1
      %v1311 = vsel %vm1291, %v1308, %v1310
      %v1312 = vrot.slane %v1255, 1
      %v1313 = vrot.slane %v1256, 1
      %v1314 = vsel %vm1291, %v1312, %v1313
      %v1315 = vrot.slane %v1257, 1
      %v1316 = vsel %vm1291, %v1313, %v1315
      %v1317 = vrot.slane %v1258, 1
      %v1318 = vrot.slane %v1259, 1
      %v1319 = vsel %vm1291, %v1317, %v1318
      %v1320 = vrot.slane %v1260, 1
      %v1321 = vsel %vm1291, %v1318, %v1320
      %v1322 = vrot.slane %v1261, 1
      %v1323 = vrot.slane %v1262, 1
      %v1324 = vsel %vm1291, %v1322, %v1323
      %v1325 = vrot.slane %v1263, 1
      %v1326 = vsel %vm1291, %v1323, %v1325
      %v1327 = vrot.slane %v1264, 1
      %v1328 = vrot.slane %v1265, 1
      %v1329 = vsel %vm1291, %v1327, %v1328
      %v1330 = vrot.slane %v1266, 1
      %v1331 = vsel %vm1291, %v1328, %v1330
      %v1348 = vadd.f32 %v1206, %v1294
      %v1349 = vadd.f32 %v1207, %v1296
      %v1350 = vadd.f32 %v1208, %v1299
      %v1351 = vadd.f32 %v1209, %v1301
      %v1352 = vadd.f32 %v1210, %v1304
      %v1353 = vadd.f32 %v1211, %v1306
      %v1354 = vadd.f32 %v1212, %v1309
      %v1355 = vadd.f32 %v1213, %v1311
      %v1356 = vadd.f32 %v1214, %v1314
      %v1357 = vadd.f32 %v1215, %v1316
      %v1358 = vadd.f32 %v1216, %v1319
      %v1359 = vadd.f32 %v1217, %v1321
      %v1360 = vadd.f32 %v1218, %v1324
      %v1361 = vadd.f32 %v1219, %v1326
      %v1362 = vadd.f32 %v1220, %v1329
      %v1363 = vadd.f32 %v1221, %v1331
      %v1364 = vld [vmem:[#allocation2] sm:$0xe]
      %v1365 = vld [vmem:[#allocation2 + $0xc] sm:$0xe]
      %v1366 = vld [vmem:[#allocation2 + $0x18] sm:$0xe]
      %v1367 = vld [vmem:[#allocation2 + $0x24] sm:$0xe]
      %v1368 = vld [vmem:[#allocation2 + $0x30] sm:$0xe]
      %v1369 = vld [vmem:[#allocation2 + $0x3c] sm:$0xe]
      %v1370 = vld [vmem:[#allocation2 + $0x48] sm:$0xe]
      %v1371 = vld [vmem:[#allocation2 + $0x54] sm:$0xe]
      %v1372 = vunpack.c.l.bf16 %v1364
      %v1373 = vunpack.c.l.bf16 %v1365
      %v1374 = vunpack.c.l.bf16 %v1366
      %v1375 = vunpack.c.l.bf16 %v1367
      %v1376 = vunpack.c.l.bf16 %v1368
      %v1377 = vunpack.c.l.bf16 %v1369
      %v1378 = vunpack.c.l.bf16 %v1370
      %v1379 = vunpack.c.l.bf16 %v1371
      %v1380 = vld [vmem:[%s1 + $0x2] sm:$0x1]
      %v1381 = vlaneseq
      %v1382 = vshrl.u32 %v1381, 7
      %v1383 = vsub.s32 0, %v1382
      %v1384 = vrot.slane %v1380, %v1383
      %v1385 = vmul.f32 %v1372, %v1384
      %v1386 = vmul.f32 %v1170, %v1384
      %v1387 = vmul.f32 %v1230, %v1384
      %v1388 = vmul.f32 %v1373, %v1384
      %v1389 = vmul.f32 %v1172, %v1384
      %v1390 = vmul.f32 %v1231, %v1384
      %v1391 = vmul.f32 %v1374, %v1384
      %v1392 = vmul.f32 %v1174, %v1384
      %v1393 = vmul.f32 %v1232, %v1384
      %v1394 = vmul.f32 %v1375, %v1384
      %v1395 = vmul.f32 %v1176, %v1384
      %v1396 = vmul.f32 %v1233, %v1384
      %v1397 = vmul.f32 %v1376, %v1384
      %v1398 = vmul.f32 %v1178, %v1384
      %v1399 = vmul.f32 %v1234, %v1384
      %v1400 = vmul.f32 %v1377, %v1384
      %v1401 = vmul.f32 %v1180, %v1384
      %v1402 = vmul.f32 %v1235, %v1384
      %v1403 = vmul.f32 %v1378, %v1384
      %v1404 = vmul.f32 %v1182, %v1384
      %v1405 = vmul.f32 %v1236, %v1384
      %v1406 = vmul.f32 %v1379, %v1384
      %v1407 = vmul.f32 %v1184, %v1384
      %v1408 = vmul.f32 %v1237, %v1384
      %vm1433 = vcmask 1045504
      %v1434 = vrot.slane %v1385, 2
      %v1435 = vrot.slane %v1386, 2
      %v1436 = vsel %vm1433, %v1434, %v1435
      %v1437 = vrot.slane %v1387, 2
      %v1438 = vsel %vm1433, %v1435, %v1437
      %v1439 = vrot.slane %v1388, 2
      %v1440 = vrot.slane %v1389, 2
      %v1441 = vsel %vm1433, %v1439, %v1440
      %v1442 = vrot.slane %v1390, 2
      %v1443 = vsel %vm1433, %v1440, %v1442
      %v1444 = vrot.slane %v1391, 2
      %v1445 = vrot.slane %v1392, 2
      %v1446 = vsel %vm1433, %v1444, %v1445
      %v1447 = vrot.slane %v1393, 2
      %v1448 = vsel %vm1433, %v1445, %v1447
      %v1449 = vrot.slane %v1394, 2
      %v1450 = vrot.slane %v1395, 2
      %v1451 = vsel %vm1433, %v1449, %v1450
      %v1452 = vrot.slane %v1396, 2
      %v1453 = vsel %vm1433, %v1450, %v1452
      %v1454 = vrot.slane %v1397, 2
      %v1455 = vrot.slane %v1398, 2
      %v1456 = vsel %vm1433, %v1454, %v1455
      %v1457 = vrot.slane %v1399, 2
      %v1458 = vsel %vm1433, %v1455, %v1457
      %v1459 = vrot.slane %v1400, 2
      %v1460 = vrot.slane %v1401, 2
      %v1461 = vsel %vm1433, %v1459, %v1460
      %v1462 = vrot.slane %v1402, 2
      %v1463 = vsel %vm1433, %v1460, %v1462
      %v1464 = vrot.slane %v1403, 2
      %v1465 = vrot.slane %v1404, 2
      %v1466 = vsel %vm1433, %v1464, %v1465
      %v1467 = vrot.slane %v1405, 2
      %v1468 = vsel %vm1433, %v1465, %v1467
      %v1469 = vrot.slane %v1406, 2
      %v1470 = vrot.slane %v1407, 2
      %v1471 = vsel %vm1433, %v1469, %v1470
      %v1472 = vrot.slane %v1408, 2
      %v1473 = vsel %vm1433, %v1470, %v1472
      %v1490 = vadd.f32 %v1348, %v1436
      %v1491 = vadd.f32 %v1349, %v1438
      %v1492 = vadd.f32 %v1350, %v1441
      %v1493 = vadd.f32 %v1351, %v1443
      %v1494 = vadd.f32 %v1352, %v1446
      %v1495 = vadd.f32 %v1353, %v1448
      %v1496 = vadd.f32 %v1354, %v1451
      %v1497 = vadd.f32 %v1355, %v1453
      %v1498 = vadd.f32 %v1356, %v1456
      %v1499 = vadd.f32 %v1357, %v1458
      %v1500 = vadd.f32 %v1358, %v1461
      %v1501 = vadd.f32 %v1359, %v1463
      %v1502 = vadd.f32 %v1360, %v1466
      %v1503 = vadd.f32 %v1361, %v1468
      %v1504 = vadd.f32 %v1362, %v1471
      %v1505 = vadd.f32 %v1363, %v1473
      %s1506 = scalar_lea.vmem [#allocation2], 12
      %v1507 = vld [vmem:[%s1506] sm:$0xf]
      %v1508 = vld [vmem:[%s1506 + $0x4] sm:$0xf]
      %v1509 = vld [vmem:[%s1506 + $0xc] sm:$0xf]
      %v1510 = vld [vmem:[%s1506 + $0x10] sm:$0xf]
      %v1511 = vld [vmem:[%s1506 + $0x18] sm:$0xf]
      %v1512 = vld [vmem:[%s1506 + $0x1c] sm:$0xf]
      %v1513 = vld [vmem:[%s1506 + $0x24] sm:$0xf]
      %v1514 = vld [vmem:[%s1506 + $0x28] sm:$0xf]
      %v1515 = vld [vmem:[%s1506 + $0x30] sm:$0xf]
      %v1516 = vld [vmem:[%s1506 + $0x34] sm:$0xf]
      %v1517 = vld [vmem:[%s1506 + $0x3c] sm:$0xf]
      %v1518 = vld [vmem:[%s1506 + $0x40] sm:$0xf]
      %v1519 = vld [vmem:[%s1506 + $0x48] sm:$0xf]
      %v1520 = vld [vmem:[%s1506 + $0x4c] sm:$0xf]
      %v1521 = vld [vmem:[%s1506 + $0x54] sm:$0xf]
      %v1522 = vld [vmem:[%s1506 + $0x58] sm:$0xf]
      %v1523 = vunpack.c.l.bf16 %v1507
      %v1524 = vunpack.c.l.bf16 %v1508
      %v1525 = vunpack.c.l.bf16 %v1509
      %v1526 = vunpack.c.l.bf16 %v1510
      %v1527 = vunpack.c.l.bf16 %v1511
      %v1528 = vunpack.c.l.bf16 %v1512
      %v1529 = vunpack.c.l.bf16 %v1513
      %v1530 = vunpack.c.l.bf16 %v1514
      %v1531 = vunpack.c.l.bf16 %v1515
      %v1532 = vunpack.c.l.bf16 %v1516
      %v1533 = vunpack.c.l.bf16 %v1517
      %v1534 = vunpack.c.l.bf16 %v1518
      %v1535 = vunpack.c.l.bf16 %v1519
      %v1536 = vunpack.c.l.bf16 %v1520
      %v1537 = vunpack.c.l.bf16 %v1521
      %v1538 = vunpack.c.l.bf16 %v1522
      %v1539 = vld [vmem:[%s1 + $0x3] sm:$0x1]
      %v1540 = vlaneseq
      %v1541 = vshrl.u32 %v1540, 7
      %v1542 = vsub.s32 0, %v1541
      %v1543 = vrot.slane %v1539, %v1542
      %v1544 = vmul.f32 %v1523, %v1543
      %v1545 = vmul.f32 %v1524, %v1543
      %v1546 = vmul.f32 %v1525, %v1543
      %v1547 = vmul.f32 %v1526, %v1543
      %v1548 = vmul.f32 %v1527, %v1543
      %v1549 = vmul.f32 %v1528, %v1543
      %v1550 = vmul.f32 %v1529, %v1543
      %v1551 = vmul.f32 %v1530, %v1543
      %v1552 = vmul.f32 %v1531, %v1543
      %v1553 = vmul.f32 %v1532, %v1543
      %v1554 = vmul.f32 %v1533, %v1543
      %v1555 = vmul.f32 %v1534, %v1543
      %v1556 = vmul.f32 %v1535, %v1543
      %v1557 = vmul.f32 %v1536, %v1543
      %v1558 = vmul.f32 %v1537, %v1543
      %v1559 = vmul.f32 %v1538, %v1543
      %v1560 = vadd.f32 %v1490, %v1544
      %v1561 = vadd.f32 %v1491, %v1545
      %v1562 = vadd.f32 %v1492, %v1546
      %v1563 = vadd.f32 %v1493, %v1547
      %v1564 = vadd.f32 %v1494, %v1548
      %v1565 = vadd.f32 %v1495, %v1549
      %v1566 = vadd.f32 %v1496, %v1550
      %v1567 = vadd.f32 %v1497, %v1551
      %v1568 = vadd.f32 %v1498, %v1552
      %v1569 = vadd.f32 %v1499, %v1553
      %v1570 = vadd.f32 %v1500, %v1554
      %v1571 = vadd.f32 %v1501, %v1555
      %v1572 = vadd.f32 %v1502, %v1556
      %v1573 = vadd.f32 %v1503, %v1557
      %v1574 = vadd.f32 %v1504, %v1558
      %v1575 = vadd.f32 %v1505, %v1559
      %v1576 = vld [vmem:[%s1506 + $0x8] sm:$0x1]
      %v1577 = vld [vmem:[%s1506 + $0x14] sm:$0x1]
      %v1578 = vld [vmem:[%s1506 + $0x20] sm:$0x1]
      %v1579 = vld [vmem:[%s1506 + $0x2c] sm:$0x1]
      %v1580 = vld [vmem:[%s1506 + $0x38] sm:$0x1]
      %v1581 = vld [vmem:[%s1506 + $0x44] sm:$0x1]
      %v1582 = vld [vmem:[%s1506 + $0x50] sm:$0x1]
      %v1583 = vld [vmem:[%s1506 + $0x5c] sm:$0x1]
      %v1584 = vunpack.c.l.bf16 %v1576
      %v1585 = vunpack.c.l.bf16 %v1577
      %v1586 = vunpack.c.l.bf16 %v1578
      %v1587 = vunpack.c.l.bf16 %v1579
      %v1588 = vunpack.c.l.bf16 %v1580
      %v1589 = vunpack.c.l.bf16 %v1581
      %v1590 = vunpack.c.l.bf16 %v1582
      %v1591 = vunpack.c.l.bf16 %v1583
      %v1592 = vld [vmem:[%s1 + $0x4] sm:$0x1]
      %v1593 = vlaneseq
      %v1594 = vshrl.u32 %v1593, 7
      %v1595 = vsub.s32 0, %v1594
      %v1596 = vrot.slane %v1592, %v1595
      %v1597 = vmul.f32 %v1523, %v1596
      %v1598 = vmul.f32 %v1524, %v1596
      %v1599 = vmul.f32 %v1584, %v1596
      %v1600 = vmul.f32 %v1525, %v1596
      %v1601 = vmul.f32 %v1526, %v1596
      %v1602 = vmul.f32 %v1585, %v1596
      %v1603 = vmul.f32 %v1527, %v1596
      %v1604 = vmul.f32 %v1528, %v1596
      %v1605 = vmul.f32 %v1586, %v1596
      %v1606 = vmul.f32 %v1529, %v1596
      %v1607 = vmul.f32 %v1530, %v1596
      %v1608 = vmul.f32 %v1587, %v1596
      %v1609 = vmul.f32 %v1531, %v1596
      %v1610 = vmul.f32 %v1532, %v1596
      %v1611 = vmul.f32 %v1588, %v1596
      %v1612 = vmul.f32 %v1533, %v1596
      %v1613 = vmul.f32 %v1534, %v1596
      %v1614 = vmul.f32 %v1589, %v1596
      %v1615 = vmul.f32 %v1535, %v1596
      %v1616 = vmul.f32 %v1536, %v1596
      %v1617 = vmul.f32 %v1590, %v1596
      %v1618 = vmul.f32 %v1537, %v1596
      %v1619 = vmul.f32 %v1538, %v1596
      %v1620 = vmul.f32 %v1591, %v1596
      %v1645 = vrot.slane %v1597, 1
      %v1646 = vrot.slane %v1598, 1
      %v1647 = vsel %vm1291, %v1645, %v1646
      %v1648 = vrot.slane %v1599, 1
      %v1649 = vsel %vm1291, %v1646, %v1648
      %v1650 = vrot.slane %v1600, 1
      %v1651 = vrot.slane %v1601, 1
      %v1652 = vsel %vm1291, %v1650, %v1651
      %v1653 = vrot.slane %v1602, 1
      %v1654 = vsel %vm1291, %v1651, %v1653
      %v1655 = vrot.slane %v1603, 1
      %v1656 = vrot.slane %v1604, 1
      %v1657 = vsel %vm1291, %v1655, %v1656
      %v1658 = vrot.slane %v1605, 1
      %v1659 = vsel %vm1291, %v1656, %v1658
      %v1660 = vrot.slane %v1606, 1
      %v1661 = vrot.slane %v1607, 1
      %v1662 = vsel %vm1291, %v1660, %v1661
      %v1663 = vrot.slane %v1608, 1
      %v1664 = vsel %vm1291, %v1661, %v1663
      %v1665 = vrot.slane %v1609, 1
      %v1666 = vrot.slane %v1610, 1
      %v1667 = vsel %vm1291, %v1665, %v1666
      %v1668 = vrot.slane %v1611, 1
      %v1669 = vsel %vm1291, %v1666, %v1668
      %v1670 = vrot.slane %v1612, 1
      %v1671 = vrot.slane %v1613, 1
      %v1672 = vsel %vm1291, %v1670, %v1671
      %v1673 = vrot.slane %v1614, 1
      %v1674 = vsel %vm1291, %v1671, %v1673
      %v1675 = vrot.slane %v1615, 1
      %v1676 = vrot.slane %v1616, 1
      %v1677 = vsel %vm1291, %v1675, %v1676
      %v1678 = vrot.slane %v1617, 1
      %v1679 = vsel %vm1291, %v1676, %v1678
      %v1680 = vrot.slane %v1618, 1
      %v1681 = vrot.slane %v1619, 1
      %v1682 = vsel %vm1291, %v1680, %v1681
      %v1683 = vrot.slane %v1620, 1
      %v1684 = vsel %vm1291, %v1681, %v1683
      %v1701 = vadd.f32 %v1560, %v1647
      %v1702 = vadd.f32 %v1561, %v1649
      %v1703 = vadd.f32 %v1562, %v1652
      %v1704 = vadd.f32 %v1563, %v1654
      %v1705 = vadd.f32 %v1564, %v1657
      %v1706 = vadd.f32 %v1565, %v1659
      %v1707 = vadd.f32 %v1566, %v1662
      %v1708 = vadd.f32 %v1567, %v1664
      %v1709 = vadd.f32 %v1568, %v1667
      %v1710 = vadd.f32 %v1569, %v1669
      %v1711 = vadd.f32 %v1570, %v1672
      %v1712 = vadd.f32 %v1571, %v1674
      %v1713 = vadd.f32 %v1572, %v1677
      %v1714 = vadd.f32 %v1573, %v1679
      %v1715 = vadd.f32 %v1574, %v1682
      %v1716 = vadd.f32 %v1575, %v1684
      %v1717 = vld [vmem:[%s1506] sm:$0xe]
      %v1718 = vld [vmem:[%s1506 + $0xc] sm:$0xe]
      %v1719 = vld [vmem:[%s1506 + $0x18] sm:$0xe]
      %v1720 = vld [vmem:[%s1506 + $0x24] sm:$0xe]
      %v1721 = vld [vmem:[%s1506 + $0x30] sm:$0xe]
      %v1722 = vld [vmem:[%s1506 + $0x3c] sm:$0xe]
      %v1723 = vld [vmem:[%s1506 + $0x48] sm:$0xe]
      %v1724 = vld [vmem:[%s1506 + $0x54] sm:$0xe]
      %v1725 = vunpack.c.l.bf16 %v1717
      %v1726 = vunpack.c.l.bf16 %v1718
      %v1727 = vunpack.c.l.bf16 %v1719
      %v1728 = vunpack.c.l.bf16 %v1720
      %v1729 = vunpack.c.l.bf16 %v1721
      %v1730 = vunpack.c.l.bf16 %v1722
      %v1731 = vunpack.c.l.bf16 %v1723
      %v1732 = vunpack.c.l.bf16 %v1724
      %v1733 = vld [vmem:[%s1 + $0x5] sm:$0x1]
      %v1734 = vlaneseq
      %v1735 = vshrl.u32 %v1734, 7
      %v1736 = vsub.s32 0, %v1735
      %v1737 = vrot.slane %v1733, %v1736
      %v1738 = vmul.f32 %v1725, %v1737
      %v1739 = vmul.f32 %v1524, %v1737
      %v1740 = vmul.f32 %v1584, %v1737
      %v1741 = vmul.f32 %v1726, %v1737
      %v1742 = vmul.f32 %v1526, %v1737
      %v1743 = vmul.f32 %v1585, %v1737
      %v1744 = vmul.f32 %v1727, %v1737
      %v1745 = vmul.f32 %v1528, %v1737
      %v1746 = vmul.f32 %v1586, %v1737
      %v1747 = vmul.f32 %v1728, %v1737
      %v1748 = vmul.f32 %v1530, %v1737
      %v1749 = vmul.f32 %v1587, %v1737
      %v1750 = vmul.f32 %v1729, %v1737
      %v1751 = vmul.f32 %v1532, %v1737
      %v1752 = vmul.f32 %v1588, %v1737
      %v1753 = vmul.f32 %v1730, %v1737
      %v1754 = vmul.f32 %v1534, %v1737
      %v1755 = vmul.f32 %v1589, %v1737
      %v1756 = vmul.f32 %v1731, %v1737
      %v1757 = vmul.f32 %v1536, %v1737
      %v1758 = vmul.f32 %v1590, %v1737
      %v1759 = vmul.f32 %v1732, %v1737
      %v1760 = vmul.f32 %v1538, %v1737
      %v1761 = vmul.f32 %v1591, %v1737
      %v1786 = vrot.slane %v1738, 2
      %v1787 = vrot.slane %v1739, 2
      %v1788 = vsel %vm1433, %v1786, %v1787
      %v1789 = vrot.slane %v1740, 2
      %v1790 = vsel %vm1433, %v1787, %v1789
      %v1791 = vrot.slane %v1741, 2
      %v1792 = vrot.slane %v1742, 2
      %v1793 = vsel %vm1433, %v1791, %v1792
      %v1794 = vrot.slane %v1743, 2
      %v1795 = vsel %vm1433, %v1792, %v1794
      %v1796 = vrot.slane %v1744, 2
      %v1797 = vrot.slane %v1745, 2
      %v1798 = vsel %vm1433, %v1796, %v1797
      %v1799 = vrot.slane %v1746, 2
      %v1800 = vsel %vm1433, %v1797, %v1799
      %v1801 = vrot.slane %v1747, 2
      %v1802 = vrot.slane %v1748, 2
      %v1803 = vsel %vm1433, %v1801, %v1802
      %v1804 = vrot.slane %v1749, 2
      %v1805 = vsel %vm1433, %v1802, %v1804
      %v1806 = vrot.slane %v1750, 2
      %v1807 = vrot.slane %v1751, 2
      %v1808 = vsel %vm1433, %v1806, %v1807
      %v1809 = vrot.slane %v1752, 2
      %v1810 = vsel %vm1433, %v1807, %v1809
      %v1811 = vrot.slane %v1753, 2
      %v1812 = vrot.slane %v1754, 2
      %v1813 = vsel %vm1433, %v1811, %v1812
      %v1814 = vrot.slane %v1755, 2
      %v1815 = vsel %vm1433, %v1812, %v1814
      %v1816 = vrot.slane %v1756, 2
      %v1817 = vrot.slane %v1757, 2
      %v1818 = vsel %vm1433, %v1816, %v1817
      %v1819 = vrot.slane %v1758, 2
      %v1820 = vsel %vm1433, %v1817, %v1819
      %v1821 = vrot.slane %v1759, 2
      %v1822 = vrot.slane %v1760, 2
      %v1823 = vsel %vm1433, %v1821, %v1822
      %v1824 = vrot.slane %v1761, 2
      %v1825 = vsel %vm1433, %v1822, %v1824
      %v1842 = vadd.f32 %v1701, %v1788
      %v1843 = vadd.f32 %v1702, %v1790
      %v1844 = vadd.f32 %v1703, %v1793
      %v1845 = vadd.f32 %v1704, %v1795
      %v1846 = vadd.f32 %v1705, %v1798
      %v1847 = vadd.f32 %v1706, %v1800
      %v1848 = vadd.f32 %v1707, %v1803
      %v1849 = vadd.f32 %v1708, %v1805
      %v1850 = vadd.f32 %v1709, %v1808
      %v1851 = vadd.f32 %v1710, %v1810
      %v1852 = vadd.f32 %v1711, %v1813
      %v1853 = vadd.f32 %v1712, %v1815
      %v1854 = vadd.f32 %v1713, %v1818
      %v1855 = vadd.f32 %v1714, %v1820
      %v1856 = vadd.f32 %v1715, %v1823
      %v1857 = vadd.f32 %v1716, %v1825
      %s1858 = scalar_lea.vmem [#allocation2], 24
      %v1859 = vld [vmem:[%s1858] sm:$0xf]
      %v1860 = vld [vmem:[%s1858 + $0x4] sm:$0xf]
      %v1861 = vld [vmem:[%s1858 + $0xc] sm:$0xf]
      %v1862 = vld [vmem:[%s1858 + $0x10] sm:$0xf]
      %v1863 = vld [vmem:[%s1858 + $0x18] sm:$0xf]
      %v1864 = vld [vmem:[%s1858 + $0x1c] sm:$0xf]
      %v1865 = vld [vmem:[%s1858 + $0x24] sm:$0xf]
      %v1866 = vld [vmem:[%s1858 + $0x28] sm:$0xf]
      %v1867 = vld [vmem:[%s1858 + $0x30] sm:$0xf]
      %v1868 = vld [vmem:[%s1858 + $0x34] sm:$0xf]
      %v1869 = vld [vmem:[%s1858 + $0x3c] sm:$0xf]
      %v1870 = vld [vmem:[%s1858 + $0x40] sm:$0xf]
      %v1871 = vld [vmem:[%s1858 + $0x48] sm:$0xf]
      %v1872 = vld [vmem:[%s1858 + $0x4c] sm:$0xf]
      %v1873 = vld [vmem:[%s1858 + $0x54] sm:$0xf]
      %v1874 = vld [vmem:[%s1858 + $0x58] sm:$0xf]
      %v1875 = vunpack.c.l.bf16 %v1859
      %v1876 = vunpack.c.l.bf16 %v1860
      %v1877 = vunpack.c.l.bf16 %v1861
      %v1878 = vunpack.c.l.bf16 %v1862
      %v1879 = vunpack.c.l.bf16 %v1863
      %v1880 = vunpack.c.l.bf16 %v1864
      %v1881 = vunpack.c.l.bf16 %v1865
      %v1882 = vunpack.c.l.bf16 %v1866
      %v1883 = vunpack.c.l.bf16 %v1867
      %v1884 = vunpack.c.l.bf16 %v1868
      %v1885 = vunpack.c.l.bf16 %v1869
      %v1886 = vunpack.c.l.bf16 %v1870
      %v1887 = vunpack.c.l.bf16 %v1871
      %v1888 = vunpack.c.l.bf16 %v1872
      %v1889 = vunpack.c.l.bf16 %v1873
      %v1890 = vunpack.c.l.bf16 %v1874
      %v1891 = vld [vmem:[%s1 + $0x6] sm:$0x1]
      %v1892 = vlaneseq
      %v1893 = vshrl.u32 %v1892, 7
      %v1894 = vsub.s32 0, %v1893
      %v1895 = vrot.slane %v1891, %v1894
      %v1896 = vmul.f32 %v1875, %v1895
      %v1897 = vmul.f32 %v1876, %v1895
      %v1898 = vmul.f32 %v1877, %v1895
      %v1899 = vmul.f32 %v1878, %v1895
      %v1900 = vmul.f32 %v1879, %v1895
      %v1901 = vmul.f32 %v1880, %v1895
      %v1902 = vmul.f32 %v1881, %v1895
      %v1903 = vmul.f32 %v1882, %v1895
      %v1904 = vmul.f32 %v1883, %v1895
      %v1905 = vmul.f32 %v1884, %v1895
      %v1906 = vmul.f32 %v1885, %v1895
      %v1907 = vmul.f32 %v1886, %v1895
      %v1908 = vmul.f32 %v1887, %v1895
      %v1909 = vmul.f32 %v1888, %v1895
      %v1910 = vmul.f32 %v1889, %v1895
      %v1911 = vmul.f32 %v1890, %v1895
      %v1912 = vadd.f32 %v1842, %v1896
      %v1913 = vadd.f32 %v1843, %v1897
      %v1914 = vadd.f32 %v1844, %v1898
      %v1915 = vadd.f32 %v1845, %v1899
      %v1916 = vadd.f32 %v1846, %v1900
      %v1917 = vadd.f32 %v1847, %v1901
      %v1918 = vadd.f32 %v1848, %v1902
      %v1919 = vadd.f32 %v1849, %v1903
      %v1920 = vadd.f32 %v1850, %v1904
      %v1921 = vadd.f32 %v1851, %v1905
      %v1922 = vadd.f32 %v1852, %v1906
      %v1923 = vadd.f32 %v1853, %v1907
      %v1924 = vadd.f32 %v1854, %v1908
      %v1925 = vadd.f32 %v1855, %v1909
      %v1926 = vadd.f32 %v1856, %v1910
      %v1927 = vadd.f32 %v1857, %v1911
      %v1928 = vld [vmem:[%s1858 + $0x8] sm:$0x1]
      %v1929 = vld [vmem:[%s1858 + $0x14] sm:$0x1]
      %v1930 = vld [vmem:[%s1858 + $0x20] sm:$0x1]
      %v1931 = vld [vmem:[%s1858 + $0x2c] sm:$0x1]
      %v1932 = vld [vmem:[%s1858 + $0x38] sm:$0x1]
      %v1933 = vld [vmem:[%s1858 + $0x44] sm:$0x1]
      %v1934 = vld [vmem:[%s1858 + $0x50] sm:$0x1]
      %v1935 = vld [vmem:[%s1858 + $0x5c] sm:$0x1]
      %v1936 = vunpack.c.l.bf16 %v1928
      %v1937 = vunpack.c.l.bf16 %v1929
      %v1938 = vunpack.c.l.bf16 %v1930
      %v1939 = vunpack.c.l.bf16 %v1931
      %v1940 = vunpack.c.l.bf16 %v1932
      %v1941 = vunpack.c.l.bf16 %v1933
      %v1942 = vunpack.c.l.bf16 %v1934
      %v1943 = vunpack.c.l.bf16 %v1935
      %v1944 = vld [vmem:[%s1 + $0x7] sm:$0x1]
      %v1945 = vlaneseq
      %v1946 = vshrl.u32 %v1945, 7
      %v1947 = vsub.s32 0, %v1946
      %v1948 = vrot.slane %v1944, %v1947
      %v1949 = vmul.f32 %v1875, %v1948
      %v1950 = vmul.f32 %v1876, %v1948
      %v1951 = vmul.f32 %v1936, %v1948
      %v1952 = vmul.f32 %v1877, %v1948
      %v1953 = vmul.f32 %v1878, %v1948
      %v1954 = vmul.f32 %v1937, %v1948
      %v1955 = vmul.f32 %v1879, %v1948
      %v1956 = vmul.f32 %v1880, %v1948
      %v1957 = vmul.f32 %v1938, %v1948
      %v1958 = vmul.f32 %v1881, %v1948
      %v1959 = vmul.f32 %v1882, %v1948
      %v1960 = vmul.f32 %v1939, %v1948
      %v1961 = vmul.f32 %v1883, %v1948
      %v1962 = vmul.f32 %v1884, %v1948
      %v1963 = vmul.f32 %v1940, %v1948
      %v1964 = vmul.f32 %v1885, %v1948
      %v1965 = vmul.f32 %v1886, %v1948
      %v1966 = vmul.f32 %v1941, %v1948
      %v1967 = vmul.f32 %v1887, %v1948
      %v1968 = vmul.f32 %v1888, %v1948
      %v1969 = vmul.f32 %v1942, %v1948
      %v1970 = vmul.f32 %v1889, %v1948
      %v1971 = vmul.f32 %v1890, %v1948
      %v1972 = vmul.f32 %v1943, %v1948
      %v1997 = vrot.slane %v1949, 1
      %v1998 = vrot.slane %v1950, 1
      %v1999 = vsel %vm1291, %v1997, %v1998
      %v2000 = vrot.slane %v1951, 1
      %v2001 = vsel %vm1291, %v1998, %v2000
      %v2002 = vrot.slane %v1952, 1
      %v2003 = vrot.slane %v1953, 1
      %v2004 = vsel %vm1291, %v2002, %v2003
      %v2005 = vrot.slane %v1954, 1
      %v2006 = vsel %vm1291, %v2003, %v2005
      %v2007 = vrot.slane %v1955, 1
      %v2008 = vrot.slane %v1956, 1
      %v2009 = vsel %vm1291, %v2007, %v2008
      %v2010 = vrot.slane %v1957, 1
      %v2011 = vsel %vm1291, %v2008, %v2010
      %v2012 = vrot.slane %v1958, 1
      %v2013 = vrot.slane %v1959, 1
      %v2014 = vsel %vm1291, %v2012, %v2013
      %v2015 = vrot.slane %v1960, 1
      %v2016 = vsel %vm1291, %v2013, %v2015
      %v2017 = vrot.slane %v1961, 1
      %v2018 = vrot.slane %v1962, 1
      %v2019 = vsel %vm1291, %v2017, %v2018
      %v2020 = vrot.slane %v1963, 1
      %v2021 = vsel %vm1291, %v2018, %v2020
      %v2022 = vrot.slane %v1964, 1
      %v2023 = vrot.slane %v1965, 1
      %v2024 = vsel %vm1291, %v2022, %v2023
      %v2025 = vrot.slane %v1966, 1
      %v2026 = vsel %vm1291, %v2023, %v2025
      %v2027 = vrot.slane %v1967, 1
      %v2028 = vrot.slane %v1968, 1
      %v2029 = vsel %vm1291, %v2027, %v2028
      %v2030 = vrot.slane %v1969, 1
      %v2031 = vsel %vm1291, %v2028, %v2030
      %v2032 = vrot.slane %v1970, 1
      %v2033 = vrot.slane %v1971, 1
      %v2034 = vsel %vm1291, %v2032, %v2033
      %v2035 = vrot.slane %v1972, 1
      %v2036 = vsel %vm1291, %v2033, %v2035
      %v2053 = vadd.f32 %v1912, %v1999
      %v2054 = vadd.f32 %v1913, %v2001
      %v2055 = vadd.f32 %v1914, %v2004
      %v2056 = vadd.f32 %v1915, %v2006
      %v2057 = vadd.f32 %v1916, %v2009
      %v2058 = vadd.f32 %v1917, %v2011
      %v2059 = vadd.f32 %v1918, %v2014
      %v2060 = vadd.f32 %v1919, %v2016
      %v2061 = vadd.f32 %v1920, %v2019
      %v2062 = vadd.f32 %v1921, %v2021
      %v2063 = vadd.f32 %v1922, %v2024
      %v2064 = vadd.f32 %v1923, %v2026
      %v2065 = vadd.f32 %v1924, %v2029
      %v2066 = vadd.f32 %v1925, %v2031
      %v2067 = vadd.f32 %v1926, %v2034
      %v2068 = vadd.f32 %v1927, %v2036
      %v2069 = vld [vmem:[%s1858] sm:$0xe]
      %v2070 = vld [vmem:[%s1858 + $0xc] sm:$0xe]
      %v2071 = vld [vmem:[%s1858 + $0x18] sm:$0xe]
      %v2072 = vld [vmem:[%s1858 + $0x24] sm:$0xe]
      %v2073 = vld [vmem:[%s1858 + $0x30] sm:$0xe]
      %v2074 = vld [vmem:[%s1858 + $0x3c] sm:$0xe]
      %v2075 = vld [vmem:[%s1858 + $0x48] sm:$0xe]
      %v2076 = vld [vmem:[%s1858 + $0x54] sm:$0xe]
      %v2077 = vunpack.c.l.bf16 %v2069
      %v2078 = vunpack.c.l.bf16 %v2070
      %v2079 = vunpack.c.l.bf16 %v2071
      %v2080 = vunpack.c.l.bf16 %v2072
      %v2081 = vunpack.c.l.bf16 %v2073
      %v2082 = vunpack.c.l.bf16 %v2074
      %v2083 = vunpack.c.l.bf16 %v2075
      %v2084 = vunpack.c.l.bf16 %v2076
      %v2085 = vld [vmem:[%s1 + $0x8] sm:$0x1]
      %v2086 = vlaneseq
      %v2087 = vshrl.u32 %v2086, 7
      %v2088 = vsub.s32 0, %v2087
      %v2089 = vrot.slane %v2085, %v2088
      %v2090 = vmul.f32 %v2077, %v2089
      %v2091 = vmul.f32 %v1876, %v2089
      %v2092 = vmul.f32 %v1936, %v2089
      %v2093 = vmul.f32 %v2078, %v2089
      %v2094 = vmul.f32 %v1878, %v2089
      %v2095 = vmul.f32 %v1937, %v2089
      %v2096 = vmul.f32 %v2079, %v2089
      %v2097 = vmul.f32 %v1880, %v2089
      %v2098 = vmul.f32 %v1938, %v2089
      %v2099 = vmul.f32 %v2080, %v2089
      %v2100 = vmul.f32 %v1882, %v2089
      %v2101 = vmul.f32 %v1939, %v2089
      %v2102 = vmul.f32 %v2081, %v2089
      %v2103 = vmul.f32 %v1884, %v2089
      %v2104 = vmul.f32 %v1940, %v2089
      %v2105 = vmul.f32 %v2082, %v2089
      %v2106 = vmul.f32 %v1886, %v2089
      %v2107 = vmul.f32 %v1941, %v2089
      %v2108 = vmul.f32 %v2083, %v2089
      %v2109 = vmul.f32 %v1888, %v2089
      %v2110 = vmul.f32 %v1942, %v2089
      %v2111 = vmul.f32 %v2084, %v2089
      %v2112 = vmul.f32 %v1890, %v2089
      %v2113 = vmul.f32 %v1943, %v2089
      %v2138 = vrot.slane %v2090, 2
      %v2139 = vrot.slane %v2091, 2
      %v2140 = vsel %vm1433, %v2138, %v2139
      %v2141 = vrot.slane %v2092, 2
      %v2142 = vsel %vm1433, %v2139, %v2141
      %v2143 = vrot.slane %v2093, 2
      %v2144 = vrot.slane %v2094, 2
      %v2145 = vsel %vm1433, %v2143, %v2144
      %v2146 = vrot.slane %v2095, 2
      %v2147 = vsel %vm1433, %v2144, %v2146
      %v2148 = vrot.slane %v2096, 2
      %v2149 = vrot.slane %v2097, 2
      %v2150 = vsel %vm1433, %v2148, %v2149
      %v2151 = vrot.slane %v2098, 2
      %v2152 = vsel %vm1433, %v2149, %v2151
      %v2153 = vrot.slane %v2099, 2
      %v2154 = vrot.slane %v2100, 2
      %v2155 = vsel %vm1433, %v2153, %v2154
      %v2156 = vrot.slane %v2101, 2
      %v2157 = vsel %vm1433, %v2154, %v2156
      %v2158 = vrot.slane %v2102, 2
      %v2159 = vrot.slane %v2103, 2
      %v2160 = vsel %vm1433, %v2158, %v2159
      %v2161 = vrot.slane %v2104, 2
      %v2162 = vsel %vm1433, %v2159, %v2161
      %v2163 = vrot.slane %v2105, 2
      %v2164 = vrot.slane %v2106, 2
      %v2165 = vsel %vm1433, %v2163, %v2164
      %v2166 = vrot.slane %v2107, 2
      %v2167 = vsel %vm1433, %v2164, %v2166
      %v2168 = vrot.slane %v2108, 2
      %v2169 = vrot.slane %v2109, 2
      %v2170 = vsel %vm1433, %v2168, %v2169
      %v2171 = vrot.slane %v2110, 2
      %v2172 = vsel %vm1433, %v2169, %v2171
      %v2173 = vrot.slane %v2111, 2
      %v2174 = vrot.slane %v2112, 2
      %v2175 = vsel %vm1433, %v2173, %v2174
      %v2176 = vrot.slane %v2113, 2
      %v2177 = vsel %vm1433, %v2174, %v2176
      %v2194 = vadd.f32 %v2053, %v2140
      %v2195 = vadd.f32 %v2054, %v2142
      %v2196 = vadd.f32 %v2055, %v2145
      %v2197 = vadd.f32 %v2056, %v2147
      %v2198 = vadd.f32 %v2057, %v2150
      %v2199 = vadd.f32 %v2058, %v2152
      %v2200 = vadd.f32 %v2059, %v2155
      %v2201 = vadd.f32 %v2060, %v2157
      %v2202 = vadd.f32 %v2061, %v2160
      %v2203 = vadd.f32 %v2062, %v2162
      %v2204 = vadd.f32 %v2063, %v2165
      %v2205 = vadd.f32 %v2064, %v2167
      %v2206 = vadd.f32 %v2065, %v2170
      %v2207 = vadd.f32 %v2066, %v2172
      %v2208 = vadd.f32 %v2067, %v2175
      %v2209 = vadd.f32 %v2068, %v2177
      %v2210 = vmax.f32 %v2194, 0.0
      %v2211 = vmax.f32 %v2195, 0.0
      %v2212 = vmax.f32 %v2196, 0.0
      %v2213 = vmax.f32 %v2197, 0.0
      %v2214 = vmax.f32 %v2198, 0.0
      %v2215 = vmax.f32 %v2199, 0.0
      %v2216 = vmax.f32 %v2200, 0.0
      %v2217 = vmax.f32 %v2201, 0.0
      %v2218 = vmax.f32 %v2202, 0.0
      %v2219 = vmax.f32 %v2203, 0.0
      %v2220 = vmax.f32 %v2204, 0.0
      %v2221 = vmax.f32 %v2205, 0.0
      %v2222 = vmax.f32 %v2206, 0.0
      %v2223 = vmax.f32 %v2207, 0.0
      %v2224 = vmax.f32 %v2208, 0.0
      %v2225 = vmax.f32 %v2209, 0.0
      %v2226 = vpack.c.bf16 %v2211, %v2210
      %v2227 = vpack.c.bf16 %v2213, %v2212
      %v2228 = vpack.c.bf16 %v2215, %v2214
      %v2229 = vpack.c.bf16 %v2217, %v2216
      %v2230 = vpack.c.bf16 %v2219, %v2218
      %v2231 = vpack.c.bf16 %v2221, %v2220
      %v2232 = vpack.c.bf16 %v2223, %v2222
      %v2233 = vpack.c.bf16 %v2225, %v2224
      %v2234 = vld [vmem:[%s3] sm:$0x3]
      %v2235 = vld [vmem:[%s4] sm:$0x1]
      %v2237 = vlaneseq
      %v2238 = vshrl.u32 %v2237, 7
      %v2239 = vsub.s32 0, %v2238
      %v2240 = vrot.slane %v2235, %v2239
      %vm2242 = vcmask 31744
      %v2244 = vsel %vm2242, %v2226, 0
      %v2247 = vsel %vm2242, %v2227, 0
      %v2250 = vsel %vm2242, %v2228, 0
      %v2253 = vsel %vm2242, %v2229, 0
      %v2256 = vsel %vm2242, %v2230, 0
      %v2259 = vsel %vm2242, %v2231, 0
      %v2262 = vsel %vm2242, %v2232, 0
      %v2265 = vsel %vm2242, %v2233, 0
      %vm2267 = vcmask 1041408
      %v2269 = vsel %vm2267, %v2234, 0
      %2271 = vmatprep.subr.bf16.mxu0 0
      %2272 = vmatpush1.bf16.msra.mxu0 %v2269
      %2273 = vmatprep.subr.bf16.mxu0 0
      %2274 = vmatpush1.bf16.msra.mxu0 0
      %2275 = vmatprep.subr.bf16.mxu0 0
      %2276 = vmatpush1.bf16.msra.mxu0 0
      %2277 = vmatprep.subr.bf16.mxu0 0
      %2278 = vmatpush1.bf16.msra.mxu0 0
      %2279 = vmatprep.subr.bf16.mxu0 0
      %2280 = vmatpush1.bf16.msra.mxu0 0
      %2281 = vmatprep.subr.bf16.mxu0 0
      %2282 = vmatpush1.bf16.msra.mxu0 0
      %2283 = vmatprep.subr.bf16.mxu0 0
      %2284 = vmatpush1.bf16.msra.mxu0 0
      %2285 = vmatprep.subr.bf16.mxu0 0
      %2286 = vmatpush1.bf16.msra.mxu0 0
      %2287 = vmatprep.subr.bf16.mxu0 0
      %2288 = vmatpush1.bf16.msra.mxu0 0
      %2289 = vmatprep.subr.bf16.mxu0 0
      %2290 = vmatpush1.bf16.msra.mxu0 0
      %2291 = vmatprep.subr.bf16.mxu0 0
      %2292 = vmatpush1.bf16.msra.mxu0 0
      %2293 = vmatprep.subr.bf16.mxu0 0
      %2294 = vmatpush1.bf16.msra.mxu0 0
      %2295 = vmatprep.subr.bf16.mxu0 0
      %2296 = vmatpush1.bf16.msra.mxu0 0
      %2297 = vmatprep.subr.bf16.mxu0 0
      %2298 = vmatpush1.bf16.msra.mxu0 0
      %2299 = vmatprep.subr.bf16.mxu0 0
      %2300 = vmatpush1.bf16.msra.mxu0 0
      %2301 = vmatprep.subr.bf16.mxu0 0
      %2302 = vmatpush1.bf16.msra.mxu0 0
      %2303 = vmatprep.mubr.bf16.mxu0 0
      %2304 = vmatmul.mubr.bf16.gmra.mrb[0].mxu0 %v2244
      %v2305 = vpop.f32.mrb[0].mxu0
      %v2306 = vadd.f32 %v2240, %v2305
      %v2307 = vpop.f32.mrb[0].mxu0
      %v2308 = vpop.f32.mrb[0].mxu0
      %v2309 = vadd.f32 %v2240, %v2308
      %v2310 = vpop.f32.mrb[0].mxu0
      %2311 = vmatprep.mubr.bf16.mxu0 0
      %2312 = vmatmul.mubr.bf16.gmra.mrb[0].mxu0 %v2247
      %v2313 = vpop.f32.mrb[0].mxu0
      %v2314 = vadd.f32 %v2240, %v2313
      %v2315 = vpop.f32.mrb[0].mxu0
      %v2316 = vpop.f32.mrb[0].mxu0
      %v2317 = vadd.f32 %v2240, %v2316
      %v2318 = vpop.f32.mrb[0].mxu0
      %2319 = vmatprep.mubr.bf16.mxu0 0
      %2320 = vmatmul.mubr.bf16.gmra.mrb[0].mxu0 %v2250
      %v2321 = vpop.f32.mrb[0].mxu0
      %v2322 = vadd.f32 %v2240, %v2321
      %v2323 = vpop.f32.mrb[0].mxu0
      %v2324 = vpop.f32.mrb[0].mxu0
      %v2325 = vadd.f32 %v2240, %v2324
      %v2326 = vpop.f32.mrb[0].mxu0
      %2327 = vmatprep.mubr.bf16.mxu0 0
      %2328 = vmatmul.mubr.bf16.gmra.mrb[0].mxu0 %v2253
      %v2329 = vpop.f32.mrb[0].mxu0
      %v2330 = vadd.f32 %v2240, %v2329
      %v2331 = vpop.f32.mrb[0].mxu0
      %v2332 = vpop.f32.mrb[0].mxu0
      %v2333 = vadd.f32 %v2240, %v2332
      %v2334 = vpop.f32.mrb[0].mxu0
      %2335 = vmatprep.mubr.bf16.mxu0 0
      %2336 = vmatmul.mubr.bf16.gmra.mrb[0].mxu0 %v2256
      %v2337 = vpop.f32.mrb[0].mxu0
      %v2338 = vadd.f32 %v2240, %v2337
      %v2339 = vpop.f32.mrb[0].mxu0
      %v2340 = vpop.f32.mrb[0].mxu0
      %v2341 = vadd.f32 %v2240, %v2340
      %v2342 = vpop.f32.mrb[0].mxu0
      %2343 = vmatprep.mubr.bf16.mxu0 0
      %2344 = vmatmul.mubr.bf16.gmra.mrb[0].mxu0 %v2259
      %v2345 = vpop.f32.mrb[0].mxu0
      %v2346 = vadd.f32 %v2240, %v2345
      %v2347 = vpop.f32.mrb[0].mxu0
      %v2348 = vpop.f32.mrb[0].mxu0
      %v2349 = vadd.f32 %v2240, %v2348
      %v2350 = vpop.f32.mrb[0].mxu0
      %2351 = vmatprep.mubr.bf16.mxu0 0
      %2352 = vmatmul.mubr.bf16.gmra.mrb[0].mxu0 %v2262
      %v2353 = vpop.f32.mrb[0].mxu0
      %v2354 = vadd.f32 %v2240, %v2353
      %v2355 = vpop.f32.mrb[0].mxu0
      %v2356 = vpop.f32.mrb[0].mxu0
      %v2357 = vadd.f32 %v2240, %v2356
      %v2358 = vpop.f32.mrb[0].mxu0
      %2359 = vmatprep.mubr.bf16.mxu0 0
      %2360 = vmatmul.mubr.bf16.gmra.mrb[0].mxu0 %v2265
      %v2361 = vpop.f32.mrb[0].mxu0
      %v2362 = vadd.f32 %v2240, %v2361
      %v2363 = vpop.f32.mrb[0].mxu0
      %v2364 = vpop.f32.mrb[0].mxu0
      %v2365 = vadd.f32 %v2240, %v2364
      %v2366 = vpop.f32.mrb[0].mxu0
      %2367 = vdwg.mxu0
      %v2368 = vmax.f32 %v2306, 0.0
      %v2369 = vmax.f32 %v2309, 0.0
      %v2370 = vmax.f32 %v2314, 0.0
      %v2371 = vmax.f32 %v2317, 0.0
      %v2372 = vmax.f32 %v2322, 0.0
      %v2373 = vmax.f32 %v2325, 0.0
      %v2374 = vmax.f32 %v2330, 0.0
      %v2375 = vmax.f32 %v2333, 0.0
      %v2376 = vmax.f32 %v2338, 0.0
      %v2377 = vmax.f32 %v2341, 0.0
      %v2378 = vmax.f32 %v2346, 0.0
      %v2379 = vmax.f32 %v2349, 0.0
      %v2380 = vmax.f32 %v2354, 0.0
      %v2381 = vmax.f32 %v2357, 0.0
      %v2382 = vmax.f32 %v2362, 0.0
      %v2383 = vmax.f32 %v2365, 0.0
      %s2384 = smul.u32 %s21, 128
      %s2385 = sshra.s32 %s2384, 3
      %s2386 = sand.u32 %s2384, 7
      %s2387 = smul.addr %s2385, 4
      %s2388 = scalar_lea.vmem %s237, %s2387
      %v2389 = vld [vmem:[%s2388] sm:$0xf]
      %v2390 = vld [vmem:[%s2388 + $0x4] sm:$0xf]
      %v2391 = vld [vmem:[%s2388 + $0x8] sm:$0xf]
      %v2392 = vld [vmem:[%s2388 + $0xc] sm:$0xf]
      %v2393 = vld [vmem:[%s2388 + $0x10] sm:$0xf]
      %v2394 = vld [vmem:[%s2388 + $0x14] sm:$0xf]
      %v2395 = vld [vmem:[%s2388 + $0x18] sm:$0xf]
      %v2396 = vld [vmem:[%s2388 + $0x1c] sm:$0xf]
      %v2397 = vld [vmem:[%s2388 + $0x20] sm:$0xf]
      %v2398 = vld [vmem:[%s2388 + $0x24] sm:$0xf]
      %v2399 = vld [vmem:[%s2388 + $0x28] sm:$0xf]
      %v2400 = vld [vmem:[%s2388 + $0x2c] sm:$0xf]
      %v2401 = vld [vmem:[%s2388 + $0x30] sm:$0xf]
      %v2402 = vld [vmem:[%s2388 + $0x34] sm:$0xf]
      %v2403 = vld [vmem:[%s2388 + $0x38] sm:$0xf]
      %v2404 = vld [vmem:[%s2388 + $0x3c] sm:$0xf]
      %v2405 = vunpack.c.l.bf16 %v2389
      %v2406 = vunpack.c.l.bf16 %v2390
      %v2407 = vunpack.c.l.bf16 %v2391
      %v2408 = vunpack.c.l.bf16 %v2392
      %v2409 = vunpack.c.l.bf16 %v2393
      %v2410 = vunpack.c.l.bf16 %v2394
      %v2411 = vunpack.c.l.bf16 %v2395
      %v2412 = vunpack.c.l.bf16 %v2396
      %v2413 = vunpack.c.l.bf16 %v2397
      %v2414 = vunpack.c.l.bf16 %v2398
      %v2415 = vunpack.c.l.bf16 %v2399
      %v2416 = vunpack.c.l.bf16 %v2400
      %v2417 = vunpack.c.l.bf16 %v2401
      %v2418 = vunpack.c.l.bf16 %v2402
      %v2419 = vunpack.c.l.bf16 %v2403
      %v2420 = vunpack.c.l.bf16 %v2404
      %v2421 = vadd.f32 %v2368, %v2405
      %v2422 = vadd.f32 %v2369, %v2406
      %v2423 = vadd.f32 %v2370, %v2407
      %v2424 = vadd.f32 %v2371, %v2408
      %v2425 = vadd.f32 %v2372, %v2409
      %v2426 = vadd.f32 %v2373, %v2410
      %v2427 = vadd.f32 %v2374, %v2411
      %v2428 = vadd.f32 %v2375, %v2412
      %v2429 = vadd.f32 %v2376, %v2413
      %v2430 = vadd.f32 %v2377, %v2414
      %v2431 = vadd.f32 %v2378, %v2415
      %v2432 = vadd.f32 %v2379, %v2416
      %v2433 = vadd.f32 %v2380, %v2417
      %v2434 = vadd.f32 %v2381, %v2418
      %v2435 = vadd.f32 %v2382, %v2419
      %v2436 = vadd.f32 %v2383, %v2420
      %v2437 = vpack.c.bf16 %v2422, %v2421
      %v2438 = vpack.c.bf16 %v2424, %v2423
      %v2439 = vpack.c.bf16 %v2426, %v2425
      %v2440 = vpack.c.bf16 %v2428, %v2427
      %v2441 = vpack.c.bf16 %v2430, %v2429
      %v2442 = vpack.c.bf16 %v2432, %v2431
      %v2443 = vpack.c.bf16 %v2434, %v2433
      %v2444 = vpack.c.bf16 %v2436, %v2435
      %v2453 = vunpack.c.l.b16 %v2437
      %v2454 = vunpack.c.h.b16 %v2437
      %v2455 = vunpack.c.l.b16 %v2438
      %v2456 = vunpack.c.h.b16 %v2438
      %v2457 = vunpack.c.l.b16 %v2439
      %v2458 = vunpack.c.h.b16 %v2439
      %v2459 = vunpack.c.l.b16 %v2440
      %v2460 = vunpack.c.h.b16 %v2440
      %v2461 = vunpack.c.l.b16 %v2441
      %v2462 = vunpack.c.h.b16 %v2441
      %v2463 = vunpack.c.l.b16 %v2442
      %v2464 = vunpack.c.h.b16 %v2442
      %v2465 = vunpack.c.l.b16 %v2443
      %v2466 = vunpack.c.h.b16 %v2443
      %v2467 = vunpack.c.l.b16 %v2444
      %v2468 = vunpack.c.h.b16 %v2444
      %v2469 = vpack.c.b16 %v2453, %v2453
      %v2470 = vpack.c.b16 %v2454, %v2454
      %v2471 = vpack.c.b16 %v2455, %v2455
      %v2472 = vpack.c.b16 %v2456, %v2456
      %v2473 = vpack.c.b16 %v2457, %v2457
      %v2474 = vpack.c.b16 %v2458, %v2458
      %v2475 = vpack.c.b16 %v2459, %v2459
      %v2476 = vpack.c.b16 %v2460, %v2460
      %v2477 = vpack.c.b16 %v2461, %v2461
      %v2478 = vpack.c.b16 %v2462, %v2462
      %v2479 = vpack.c.b16 %v2463, %v2463
      %v2480 = vpack.c.b16 %v2464, %v2464
      %v2481 = vpack.c.b16 %v2465, %v2465
      %v2482 = vpack.c.b16 %v2466, %v2466
      %v2483 = vpack.c.b16 %v2467, %v2467
      %v2484 = vpack.c.b16 %v2468, %v2468
      %vm2501 = vcmask 27648
      %2502 = vst.msk [vmem:[%s246] sm:$0xf] %vm2501, %v2469
      %2503 = vst.msk [vmem:[%s246 + $0x4] sm:$0xf] %vm2501, %v2470
      %2504 = vst.msk [vmem:[%s246 + $0x8] sm:$0xf] %vm2501, %v2471
      %2505 = vst.msk [vmem:[%s246 + $0xc] sm:$0xf] %vm2501, %v2472
      %2506 = vst.msk [vmem:[%s246 + $0x10] sm:$0xf] %vm2501, %v2473
      %2507 = vst.msk [vmem:[%s246 + $0x14] sm:$0xf] %vm2501, %v2474
      %2508 = vst.msk [vmem:[%s246 + $0x18] sm:$0xf] %vm2501, %v2475
      %2509 = vst.msk [vmem:[%s246 + $0x1c] sm:$0xf] %vm2501, %v2476
      %2510 = vst.msk [vmem:[%s246 + $0x20] sm:$0xf] %vm2501, %v2477
      %2511 = vst.msk [vmem:[%s246 + $0x24] sm:$0xf] %vm2501, %v2478
      %2512 = vst.msk [vmem:[%s246 + $0x28] sm:$0xf] %vm2501, %v2479
      %2513 = vst.msk [vmem:[%s246 + $0x2c] sm:$0xf] %vm2501, %v2480
      %2514 = vst.msk [vmem:[%s246 + $0x30] sm:$0xf] %vm2501, %v2481
      %2515 = vst.msk [vmem:[%s246 + $0x34] sm:$0xf] %vm2501, %v2482
      %2516 = vst.msk [vmem:[%s246 + $0x38] sm:$0xf] %vm2501, %v2483
      %2517 = vst.msk [vmem:[%s246 + $0x3c] sm:$0xf] %vm2501, %v2484
      %s2518 = smul.u32 16, %s21
      %p2519 = scmp.lt.s32.totalorder %s20, 1
      %s2520 = scalar_select %p2519, %s20, 1
      %p2521 = scmp.lt.s32.totalorder %s2518, 31
      %s2522 = scalar_select %p2521, %s2518, 31
      %s2523 = smul.addr %s2520, 32
      %s2524 = sadd.s32 %s2522, %s2523
      %s2525 = smul.addr %s2524, 4
      %s2526 = scalar_lea.vmem %s5, %s2525
      // Predicated region
      $region53: #{quant_inverted_res_block.1} parent=39 // pred_check
        %p2527 = pneg %p158
      $region54: #{quant_inverted_res_block.1} parent=39 // pred_check_branch
        %2529 = sbr.rel (%p2527) target = $region56
      $region55: #{quant_inverted_res_block.1} parent=39 // pred_region
        %s2530 = smul.u32 16, %s21
      $region56: #{quant_inverted_res_block.1} parent=39 // pred_fallthru
        _
    $region40: #{quant_inverted_res_block.1} parent=5 // pred_fallthru
      _
    %p2531 = scmp.le.s32.totalorder 2, %s11
    // Predicated region
    $region57: #{quant_inverted_res_block.1} parent=5 // pred_check
      %p2532 = pneg %p2531
    $region58: #{quant_inverted_res_block.1} parent=5 // pred_check_branch
      %2534 = sbr.rel (%p2532) target = $region60
    $region59: #{quant_inverted_res_block.1} parent=5 // pred_region
      %s2535 = ssub.s32 %s11, 2
      // Predicated region
      $region61: #{quant_inverted_res_block.1} parent=59 // pred_check
        %p2536 = pneg %p164
      $region62: #{quant_inverted_res_block.1} parent=59 // pred_check_branch
        %2538 = sbr.rel (%p2536) target = $region64
      $region63: #{quant_inverted_res_block.1} parent=59 // pred_region
        %s2539 = smul.u32 16, %s23
        %p2540 = scmp.lt.s32.totalorder %s22, 1
        %s2541 = scalar_select %p2540, %s22, 1
        %p2542 = scmp.lt.s32.totalorder %s2539, 31
        %s2543 = scalar_select %p2542, %s2539, 31
        %s2544 = smul.addr %s2541, 32
        %s2545 = sadd.s32 %s2543, %s2544
        %s2546 = smul.addr %s2545, 4
        %s2547 = scalar_lea.vmem %s5, %s2546
      $region64: #{quant_inverted_res_block.1} parent=59 // pred_fallthru
        _
    $region60: #{quant_inverted_res_block.1} parent=5 // pred_fallthru
      _
  $region6: #{quant_inverted_res_block.1} parent=0 // loop_footer
    %s15 = sadd.s32 1, %s11
  $region7: #{quant_inverted_res_block.1} parent=0 // loop_footer_branch
    %10 = sbr.rel target = $region3
  $region8: #{quant_inverted_res_block.1} parent=0 // loop_exit
    _

</llo_original>
